<compile_context>
chip_gen: v6e
topology: v6e:2x2x1
jax: 0.10.0
libtpu: 0.0.40
codegen_flags: <defaults>
</compile_context>

<pallas_src>
import functools

import jax
import jax.numpy as jnp
from jax.experimental import pallas as pl
from jax.experimental.pallas import tpu as pltpu


def _round_up(x, m):
    return ((x + m - 1) // m) * m


# ----------------------------------------------------------------------------
# Kernels
# ----------------------------------------------------------------------------
def _matmul_bias_kernel(x_ref, w_ref, b_ref, o_ref, *, apply_relu):
    acc = jnp.dot(x_ref[...], w_ref[...], preferred_element_type=jnp.float32)
    acc = acc + b_ref[...]
    if apply_relu:
        acc = jnp.maximum(acc, 0.0)
    o_ref[...] = acc.astype(o_ref.dtype)


def _fused_fc_kernel(x_ref, w1_ref, b1_ref, w2_ref, b2_ref, o_ref):
    # fc1 + ReLU; hidden activation stays resident in VMEM.
    h = jnp.dot(x_ref[...], w1_ref[...], preferred_element_type=jnp.float32)
    h = jnp.maximum(h + b1_ref[...], 0.0)
    # fc2 (lane-dense padded N).
    o = jnp.dot(h, w2_ref[...], preferred_element_type=jnp.float32) + b2_ref[...]
    o_ref[...] = o.astype(o_ref.dtype)


# ----------------------------------------------------------------------------
# Pallas wrappers
# ----------------------------------------------------------------------------
def matmul_bias(x, w, b2d, *, relu, max_tile_m=512):
    """(M,K) @ (K,N) + b, optional ReLU. Tile_m is right-sized to M (min pad)."""
    M, K = x.shape
    Kw, N = w.shape
    assert K == Kw
    tile_m = min(_round_up(M, 8), max_tile_m)
    m_pad = _round_up(M, tile_m)
    if m_pad != M:
        x = jnp.pad(x, ((0, m_pad - M), (0, 0)))
    out = pl.pallas_call(
        functools.partial(_matmul_bias_kernel, apply_relu=relu),
        out_shape=jax.ShapeDtypeStruct((m_pad, N), jnp.float32),
        grid=(m_pad // tile_m,),
        in_specs=[
            pl.BlockSpec((tile_m, K), lambda i: (i, 0)),
            pl.BlockSpec((K, N), lambda i: (0, 0)),
            pl.BlockSpec((1, N), lambda i: (0, 0)),
        ],
        out_specs=pl.BlockSpec((tile_m, N), lambda i: (i, 0)),
        compiler_params=pltpu.CompilerParams(
            dimension_semantics=("parallel",)),
    )(x, w, b2d)
    return out[:M] if m_pad != M else out


def fused_fc(x, w1, b1_2d, w2_pad, b2_pad_2d):
    """ReLU(x @ w1 + b1) @ w2_pad + b2_pad in a single pallas_call (grid=1)."""
    M, K = x.shape
    H = w1.shape[1]
    Np = w2_pad.shape[1]
    m_pad = _round_up(M, 8)
    if m_pad != M:
        x = jnp.pad(x, ((0, m_pad - M), (0, 0)))
    out = pl.pallas_call(
        _fused_fc_kernel,
        out_shape=jax.ShapeDtypeStruct((m_pad, Np), jnp.float32),
        grid=(1,),
        in_specs=[
            pl.BlockSpec((m_pad, K), lambda i: (0, 0)),
            pl.BlockSpec((K, H), lambda i: (0, 0)),
            pl.BlockSpec((1, H), lambda i: (0, 0)),
            pl.BlockSpec((H, Np), lambda i: (0, 0)),
            pl.BlockSpec((1, Np), lambda i: (0, 0)),
        ],
        out_specs=pl.BlockSpec((m_pad, Np), lambda i: (0, 0)),
    )(x, w1, b1_2d, w2_pad, b2_pad_2d)
    return out[:M]


# ----------------------------------------------------------------------------
# Conv via im2col (plain-JAX patch extraction, fused under jit)
# ----------------------------------------------------------------------------
# TODO(synk): for large batches, fuse im2col into the conv kernel (strided
# pl.ds reads over an NHWC in_spec) to avoid materializing overlapping patches.
def _im2col_nhwc(x, kh, kw, stride):
    """x: (B,H,W,C) -> (B,Ho,Wo,kh*kw*C) valid-padding strided patches."""
    B, H, W, C = x.shape
    ho = (H - kh) // stride + 1
    wo = (W - kw) // stride + 1
    cols = []
    for i in range(kh):
        for j in range(kw):
            cols.append(x[:, i:i + stride * ho:stride, j:j + stride * wo:stride, :])
    p = jnp.stack(cols, axis=3)  # (B, ho, wo, kh*kw, C)
    return p.reshape(B, ho, wo, kh * kw * C), ho, wo


def conv2d_relu(x_nhwc, w2d, b2d, *, kh, kw, stride):
    """Conv2d (valid) + bias + ReLU via im2col + Pallas matmul kernel."""
    B, _, _, cin = x_nhwc.shape
    cout = w2d.shape[1]
    patches, ho, wo = _im2col_nhwc(x_nhwc, kh, kw, stride)
    x2d = patches.reshape(B * ho * wo, kh * kw * cin)
    y2d = matmul_bias(x2d, w2d, b2d, relu=True)
    return y2d.reshape(B, ho, wo, cout)


# ----------------------------------------------------------------------------
# Parameter preparation (done ONCE, outside the per-step forward)
# ----------------------------------------------------------------------------
def prepare_params(params, lane=128):
    def conv_w2d(w_oihw):
        cout, cin, kh, kw = w_oihw.shape
        # (kh, kw, cin, cout) matches the im2col K ordering.
        return jnp.transpose(w_oihw, (2, 3, 1, 0)).reshape(kh * kw * cin, cout)

    n = params["fc2_w"].shape[1]
    n_pad = _round_up(n, lane)
    return {
        "c1_w": conv_w2d(params["w1"]), "c1_b": params["b1"].reshape(1, -1),
        "c2_w": conv_w2d(params["w2"]), "c2_b": params["b2"].reshape(1, -1),
        "c3_w": conv_w2d(params["w3"]), "c3_b": params["b3"].reshape(1, -1),
        "fc1_w": params["fc1_w"], "fc1_b": params["fc1_b"].reshape(1, -1),
        "fc2_w": jnp.pad(params["fc2_w"], ((0, 0), (0, n_pad - n))),
        "fc2_b": jnp.pad(params["fc2_b"], (0, n_pad - n)).reshape(1, -1),
    }


def dqn_forward(prep, num_actions, x_nchw):
    """Forward pass matching the PyTorch DQN module. x_nchw: (B, C, H, W)."""
    x = jnp.transpose(x_nchw, (0, 2, 3, 1))                      # NCHW -> NHWC
    x = conv2d_relu(x, prep["c1_w"], prep["c1_b"], kh=8, kw=8, stride=4)
    x = conv2d_relu(x, prep["c2_w"], prep["c2_b"], kh=4, kw=4, stride=2)
    x = conv2d_relu(x, prep["c3_w"], prep["c3_b"], kh=3, kw=3, stride=2)
    x = jnp.transpose(x, (0, 3, 1, 2))                           # back to NCHW
    x = x.reshape(x.shape[0], -1)                                # torch x.view(B,-1)
    out = fused_fc(x, prep["fc1_w"], prep["fc1_b"], prep["fc2_w"], prep["fc2_b"])
    return out[:, :num_actions]


# ----------------------------------------------------------------------------
# Pure-JAX reference
# ----------------------------------------------------------------------------
def dqn_reference(params, x_nchw):
    def conv(x, w, b, stride):
        y = jax.lax.conv_general_dilated(
            x, w, window_strides=(stride, stride), padding="VALID",
            dimension_numbers=("NCHW", "OIHW", "NCHW"))
        return jax.nn.relu(y + b[None, :, None, None])

    x = conv(x_nchw, params["w1"], params["b1"], 4)
    x = conv(x, params["w2"], params["b2"], 2)
    x = conv(x, params["w3"], params["b3"], 2)
    x = x.reshape(x.shape[0], -1)
    x = jax.nn.relu(x @ params["fc1_w"] + params["fc1_b"])
    return x @ params["fc2_w"] + params["fc2_b"]


if __name__ == "__main__":
    key = jax.random.PRNGKey(0)
    B, C, H, W = 2, 4, 52, 52            # small DQN-style input (input_shape = (4,52,52))
    num_actions = 6

    # Conv output arithmetic (matches _calculate_feature_size).
    h1, w1 = (H - 8) // 4 + 1, (W - 8) // 4 + 1
    h2, w2 = (h1 - 4) // 2 + 1, (w1 - 4) // 2 + 1
    h3, w3 = (h2 - 3) // 2 + 1, (w2 - 3) // 2 + 1
    feat = 64 * h3 * w3

    ks = jax.random.split(key, 11)

    def init(k, shape, scale=0.05):
        return (scale * jax.random.normal(k, shape)).astype(jnp.float32)

    params = dict(
        w1=init(ks[0], (32, C, 8, 8)),  b1=init(ks[1], (32,)),
        w2=init(ks[2], (64, 32, 4, 4)), b2=init(ks[3], (64,)),
        w3=init(ks[4], (64, 64, 3, 3)), b3=init(ks[5], (64,)),
        fc1_w=init(ks[6], (feat, 512)), fc1_b=init(ks[7], (512,)),
        fc2_w=init(ks[8], (512, num_actions)), fc2_b=init(ks[9], (num_actions,)),
    )
    x = jax.random.normal(ks[10], (B, C, H, W), dtype=jnp.float32)

    # Weight transposes / bias reshapes / fc2 lane-padding done once, up front.
    prep = prepare_params(params)
    fwd = jax.jit(functools.partial(dqn_forward, prep, num_actions))

    out = jax.block_until_ready(fwd(x))
    ref = jax.block_until_ready(dqn_reference(params, x))

    assert out.shape == (B, num_actions), out.shape
    if not jnp.allclose(out, ref, rtol=2e-2, atol=2e-2):
        raise AssertionError("Pallas DQN output mismatches JAX reference")
    print("KERNEL_OK")
</pallas_src>

<mosaic_0001>
module attributes {stable_mosaic.version = 11 : i64} {
  func.func @_matmul_bias_kernel(%arg0: i32, %arg1: memref<288x256xf32, #tpu.memory_space<vmem>>, %arg2: memref<256x32xf32, #tpu.memory_space<vmem>>, %arg3: memref<1x32xf32, #tpu.memory_space<vmem>>, %arg4: memref<288x32xf32, #tpu.memory_space<vmem>>) attributes {dimension_semantics = [#tpu.dimension_semantics<parallel>], iteration_bounds = array<i64: 1>, scalar_prefetch = 0 : i64, scratch_operands = 0 : i64, tpu.core_type = #tpu.core_type<tc>, window_params = [{transform_indices = @transform_0, window_bounds = array<i64: 288, 256>}, {pipeline_mode = #tpu.pipeline_mode<synchronous>, transform_indices = @transform_1, window_bounds = array<i64: 256, 32>}, {pipeline_mode = #tpu.pipeline_mode<synchronous>, transform_indices = @transform_2, window_bounds = array<i64: 1, 32>}, {transform_indices = @transform_3, window_bounds = array<i64: 288, 32>}]} {
    %c0 = arith.constant 0 : index
    %c0_0 = arith.constant 0 : index
    %0 = vector.load %arg1[%c0, %c0_0] : memref<288x256xf32, #tpu.memory_space<vmem>>, vector<288x256xf32>
    %c0_1 = arith.constant 0 : index
    %c0_2 = arith.constant 0 : index
    %1 = vector.load %arg2[%c0_1, %c0_2] : memref<256x32xf32, #tpu.memory_space<vmem>>, vector<256x32xf32>
    %cst = arith.constant dense<0.000000e+00> : vector<288x32xf32>
    %2 = tpu.matmul %0, %1, %cst {dimension_numbers = #tpu.dot_dimension_numbers<[1], [0], [0], [1], [0, 0, 1, 1], [], []>} : vector<288x256xf32>, vector<256x32xf32>, vector<288x32xf32> -> vector<288x32xf32>
    %c0_3 = arith.constant 0 : index
    %c0_4 = arith.constant 0 : index
    %3 = vector.load %arg3[%c0_3, %c0_4] : memref<1x32xf32, #tpu.memory_space<vmem>>, vector<1x32xf32>
    %4 = vector.broadcast %3 : vector<1x32xf32> to vector<288x32xf32>
    %5 = arith.addf %2, %4 : vector<288x32xf32>
    %cst_5 = arith.constant 0.000000e+00 : f32
    %6 = vector.broadcast %cst_5 : f32 to vector<288x32xf32>
    %7 = arith.maximumf %5, %6 : vector<288x32xf32>
    %c0_6 = arith.constant 0 : index
    %c0_7 = arith.constant 0 : index
    %8 = vector.load %arg4[%c0_6, %c0_7] : memref<288x32xf32, #tpu.memory_space<vmem>>, vector<288x32xf32>
    tpu.vector_store %arg4[%c0_6, %c0_7], %7 {strides = array<i32>} : memref<288x32xf32, #tpu.memory_space<vmem>>, vector<288x32xf32>,
    return
  }
  func.func @transform_0(%arg0: i32) -> (i32, i32) {
    %c0_i32 = arith.constant 0 : i32
    %c0_i32_0 = arith.constant 0 : i32
    return %arg0, %c0_i32 : i32, i32
  }
  func.func @transform_1(%arg0: i32) -> (i32, i32) {
    %c0_i32 = arith.constant 0 : i32
    %c0_i32_0 = arith.constant 0 : i32
    %c0_i32_1 = arith.constant 0 : i32
    return %c0_i32, %c0_i32_0 : i32, i32
  }
  func.func @transform_2(%arg0: i32) -> (i32, i32) {
    %c0_i32 = arith.constant 0 : i32
    %c0_i32_0 = arith.constant 0 : i32
    %c0_i32_1 = arith.constant 0 : i32
    return %c0_i32, %c0_i32_0 : i32, i32
  }
  func.func @transform_3(%arg0: i32) -> (i32, i32) {
    %c0_i32 = arith.constant 0 : i32
    %c0_i32_0 = arith.constant 0 : i32
    return %arg0, %c0_i32 : i32, i32
  }
}

module attributes {stable_mosaic.version = 11 : i64} {
  func.func @_matmul_bias_kernel(%arg0: i32, %arg1: memref<56x512xf32, #tpu.memory_space<vmem>>, %arg2: memref<512x64xf32, #tpu.memory_space<vmem>>, %arg3: memref<1x64xf32, #tpu.memory_space<vmem>>, %arg4: memref<56x64xf32, #tpu.memory_space<vmem>>) attributes {dimension_semantics = [#tpu.dimension_semantics<parallel>], iteration_bounds = array<i64: 1>, scalar_prefetch = 0 : i64, scratch_operands = 0 : i64, tpu.core_type = #tpu.core_type<tc>, window_params = [{transform_indices = @transform_0, window_bounds = array<i64: 56, 512>}, {pipeline_mode = #tpu.pipeline_mode<synchronous>, transform_indices = @transform_1, window_bounds = array<i64: 512, 64>}, {pipeline_mode = #tpu.pipeline_mode<synchronous>, transform_indices = @transform_2, window_bounds = array<i64: 1, 64>}, {transform_indices = @transform_3, window_bounds = array<i64: 56, 64>}]} {
    %c0 = arith.constant 0 : index
    %c0_0 = arith.constant 0 : index
    %0 = vector.load %arg1[%c0, %c0_0] : memref<56x512xf32, #tpu.memory_space<vmem>>, vector<56x512xf32>
    %c0_1 = arith.constant 0 : index
    %c0_2 = arith.constant 0 : index
    %1 = vector.load %arg2[%c0_1, %c0_2] : memref<512x64xf32, #tpu.memory_space<vmem>>, vector<512x64xf32>
    %cst = arith.constant dense<0.000000e+00> : vector<56x64xf32>
    %2 = tpu.matmul %0, %1, %cst {dimension_numbers = #tpu.dot_dimension_numbers<[1], [0], [0], [1], [0, 0, 1, 1], [], []>} : vector<56x512xf32>, vector<512x64xf32>, vector<56x64xf32> -> vector<56x64xf32>
    %c0_3 = arith.constant 0 : index
    %c0_4 = arith.constant 0 : index
    %3 = vector.load %arg3[%c0_3, %c0_4] : memref<1x64xf32, #tpu.memory_space<vmem>>, vector<1x64xf32>
    %4 = vector.broadcast %3 : vector<1x64xf32> to vector<56x64xf32>
    %5 = arith.addf %2, %4 : vector<56x64xf32>
    %cst_5 = arith.constant 0.000000e+00 : f32
    %6 = vector.broadcast %cst_5 : f32 to vector<56x64xf32>
    %7 = arith.maximumf %5, %6 : vector<56x64xf32>
    %c0_6 = arith.constant 0 : index
    %c0_7 = arith.constant 0 : index
    %8 = vector.load %arg4[%c0_6, %c0_7] : memref<56x64xf32, #tpu.memory_space<vmem>>, vector<56x64xf32>
    tpu.vector_store %arg4[%c0_6, %c0_7], %7 {strides = array<i32>} : memref<56x64xf32, #tpu.memory_space<vmem>>, vector<56x64xf32>,
    return
  }
  func.func @transform_0(%arg0: i32) -> (i32, i32) {
    %c0_i32 = arith.constant 0 : i32
    %c0_i32_0 = arith.constant 0 : i32
    return %arg0, %c0_i32 : i32, i32
  }
  func.func @transform_1(%arg0: i32) -> (i32, i32) {
    %c0_i32 = arith.constant 0 : i32
    %c0_i32_0 = arith.constant 0 : i32
    %c0_i32_1 = arith.constant 0 : i32
    return %c0_i32, %c0_i32_0 : i32, i32
  }
  func.func @transform_2(%arg0: i32) -> (i32, i32) {
    %c0_i32 = arith.constant 0 : i32
    %c0_i32_0 = arith.constant 0 : i32
    %c0_i32_1 = arith.constant 0 : i32
    return %c0_i32, %c0_i32_0 : i32, i32
  }
  func.func @transform_3(%arg0: i32) -> (i32, i32) {
    %c0_i32 = arith.constant 0 : i32
    %c0_i32_0 = arith.constant 0 : i32
    return %arg0, %c0_i32 : i32, i32
  }
}

module attributes {stable_mosaic.version = 11 : i64} {
  func.func @_matmul_bias_kernel(%arg0: i32, %arg1: memref<8x576xf32, #tpu.memory_space<vmem>>, %arg2: memref<576x64xf32, #tpu.memory_space<vmem>>, %arg3: memref<1x64xf32, #tpu.memory_space<vmem>>, %arg4: memref<8x64xf32, #tpu.memory_space<vmem>>) attributes {dimension_semantics = [#tpu.dimension_semantics<parallel>], iteration_bounds = array<i64: 1>, scalar_prefetch = 0 : i64, scratch_operands = 0 : i64, tpu.core_type = #tpu.core_type<tc>, window_params = [{transform_indices = @transform_0, window_bounds = array<i64: 8, 576>}, {pipeline_mode = #tpu.pipeline_mode<synchronous>, transform_indices = @transform_1, window_bounds = array<i64: 576, 64>}, {pipeline_mode = #tpu.pipeline_mode<synchronous>, transform_indices = @transform_2, window_bounds = array<i64: 1, 64>}, {transform_indices = @transform_3, window_bounds = array<i64: 8, 64>}]} {
    %c0 = arith.constant 0 : index
    %c0_0 = arith.constant 0 : index
    %0 = vector.load %arg1[%c0, %c0_0] : memref<8x576xf32, #tpu.memory_space<vmem>>, vector<8x576xf32>
    %c0_1 = arith.constant 0 : index
    %c0_2 = arith.constant 0 : index
    %1 = vector.load %arg2[%c0_1, %c0_2] : memref<576x64xf32, #tpu.memory_space<vmem>>, vector<576x64xf32>
    %cst = arith.constant dense<0.000000e+00> : vector<8x64xf32>
    %2 = tpu.matmul %0, %1, %cst {dimension_numbers = #tpu.dot_dimension_numbers<[1], [0], [0], [1], [0, 0, 1, 1], [], []>} : vector<8x576xf32>, vector<576x64xf32>, vector<8x64xf32> -> vector<8x64xf32>
    %c0_3 = arith.constant 0 : index
    %c0_4 = arith.constant 0 : index
    %3 = vector.load %arg3[%c0_3, %c0_4] : memref<1x64xf32, #tpu.memory_space<vmem>>, vector<1x64xf32>
    %4 = vector.broadcast %3 : vector<1x64xf32> to vector<8x64xf32>
    %5 = arith.addf %2, %4 : vector<8x64xf32>
    %cst_5 = arith.constant 0.000000e+00 : f32
    %6 = vector.broadcast %cst_5 : f32 to vector<8x64xf32>
    %7 = arith.maximumf %5, %6 : vector<8x64xf32>
    %c0_6 = arith.constant 0 : index
    %c0_7 = arith.constant 0 : index
    %8 = vector.load %arg4[%c0_6, %c0_7] : memref<8x64xf32, #tpu.memory_space<vmem>>, vector<8x64xf32>
    tpu.vector_store %arg4[%c0_6, %c0_7], %7 {strides = array<i32>} : memref<8x64xf32, #tpu.memory_space<vmem>>, vector<8x64xf32>,
    return
  }
  func.func @transform_0(%arg0: i32) -> (i32, i32) {
    %c0_i32 = arith.constant 0 : i32
    %c0_i32_0 = arith.constant 0 : i32
    return %arg0, %c0_i32 : i32, i32
  }
  func.func @transform_1(%arg0: i32) -> (i32, i32) {
    %c0_i32 = arith.constant 0 : i32
    %c0_i32_0 = arith.constant 0 : i32
    %c0_i32_1 = arith.constant 0 : i32
    return %c0_i32, %c0_i32_0 : i32, i32
  }
  func.func @transform_2(%arg0: i32) -> (i32, i32) {
    %c0_i32 = arith.constant 0 : i32
    %c0_i32_0 = arith.constant 0 : i32
    %c0_i32_1 = arith.constant 0 : i32
    return %c0_i32, %c0_i32_0 : i32, i32
  }
  func.func @transform_3(%arg0: i32) -> (i32, i32) {
    %c0_i32 = arith.constant 0 : i32
    %c0_i32_0 = arith.constant 0 : i32
    return %arg0, %c0_i32 : i32, i32
  }
}

module attributes {stable_mosaic.version = 11 : i64} {
  func.func @_fused_fc_kernel(%arg0: i32, %arg1: memref<8x256xf32, #tpu.memory_space<vmem>>, %arg2: memref<256x512xf32, #tpu.memory_space<vmem>>, %arg3: memref<1x512xf32, #tpu.memory_space<vmem>>, %arg4: memref<512x128xf32, #tpu.memory_space<vmem>>, %arg5: memref<1x128xf32, #tpu.memory_space<vmem>>, %arg6: memref<8x128xf32, #tpu.memory_space<vmem>>) attributes {dimension_semantics = [#tpu.dimension_semantics<arbitrary>], iteration_bounds = array<i64: 1>, scalar_prefetch = 0 : i64, scratch_operands = 0 : i64, tpu.core_type = #tpu.core_type<tc>, window_params = [{pipeline_mode = #tpu.pipeline_mode<synchronous>, transform_indices = @transform_0, window_bounds = array<i64: 8, 256>}, {pipeline_mode = #tpu.pipeline_mode<synchronous>, transform_indices = @transform_1, window_bounds = array<i64: 256, 512>}, {pipeline_mode = #tpu.pipeline_mode<synchronous>, transform_indices = @transform_2, window_bounds = array<i64: 1, 512>}, {pipeline_mode = #tpu.pipeline_mode<synchronous>, transform_indices = @transform_3, window_bounds = array<i64: 512, 128>}, {pipeline_mode = #tpu.pipeline_mode<synchronous>, transform_indices = @transform_4, window_bounds = array<i64: 1, 128>}, {pipeline_mode = #tpu.pipeline_mode<synchronous>, transform_indices = @transform_5, window_bounds = array<i64: 8, 128>}]} {
    %c0 = arith.constant 0 : index
    %c0_0 = arith.constant 0 : index
    %0 = vector.load %arg1[%c0, %c0_0] : memref<8x256xf32, #tpu.memory_space<vmem>>, vector<8x256xf32>
    %c0_1 = arith.constant 0 : index
    %c0_2 = arith.constant 0 : index
    %1 = vector.load %arg2[%c0_1, %c0_2] : memref<256x512xf32, #tpu.memory_space<vmem>>, vector<256x512xf32>
    %cst = arith.constant dense<0.000000e+00> : vector<8x512xf32>
    %2 = tpu.matmul %0, %1, %cst {dimension_numbers = #tpu.dot_dimension_numbers<[1], [0], [0], [1], [0, 0, 1, 1], [], []>} : vector<8x256xf32>, vector<256x512xf32>, vector<8x512xf32> -> vector<8x512xf32>
    %c0_3 = arith.constant 0 : index
    %c0_4 = arith.constant 0 : index
    %3 = vector.load %arg3[%c0_3, %c0_4] : memref<1x512xf32, #tpu.memory_space<vmem>>, vector<1x512xf32>
    %4 = vector.broadcast %3 : vector<1x512xf32> to vector<8x512xf32>
    %5 = arith.addf %2, %4 : vector<8x512xf32>
    %cst_5 = arith.constant 0.000000e+00 : f32
    %6 = vector.broadcast %cst_5 : f32 to vector<8x512xf32>
    %7 = arith.maximumf %5, %6 : vector<8x512xf32>
    %c0_6 = arith.constant 0 : index
    %c0_7 = arith.constant 0 : index
    %8 = vector.load %arg4[%c0_6, %c0_7] : memref<512x128xf32, #tpu.memory_space<vmem>>, vector<512x128xf32>
    %cst_8 = arith.constant dense<0.000000e+00> : vector<8x128xf32>
    %9 = tpu.matmul %7, %8, %cst_8 {dimension_numbers = #tpu.dot_dimension_numbers<[1], [0], [0], [1], [0, 0, 1, 1], [], []>} : vector<8x512xf32>, vector<512x128xf32>, vector<8x128xf32> -> vector<8x128xf32>
    %c0_9 = arith.constant 0 : index
    %c0_10 = arith.constant 0 : index
    %10 = vector.load %arg5[%c0_9, %c0_10] : memref<1x128xf32, #tpu.memory_space<vmem>>, vector<1x128xf32>
    %11 = vector.broadcast %10 : vector<1x128xf32> to vector<8x128xf32>
    %12 = arith.addf %9, %11 : vector<8x128xf32>
    %c0_11 = arith.constant 0 : index
    %c0_12 = arith.constant 0 : index
    %13 = vector.load %arg6[%c0_11, %c0_12] : memref<8x128xf32, #tpu.memory_space<vmem>>, vector<8x128xf32>
    tpu.vector_store %arg6[%c0_11, %c0_12], %12 {strides = array<i32>} : memref<8x128xf32, #tpu.memory_space<vmem>>, vector<8x128xf32>,
    return
  }
  func.func @transform_0(%arg0: i32) -> (i32, i32) {
    %c0_i32 = arith.constant 0 : i32
    %c0_i32_0 = arith.constant 0 : i32
    %c0_i32_1 = arith.constant 0 : i32
    return %c0_i32, %c0_i32_0 : i32, i32
  }
  func.func @transform_1(%arg0: i32) -> (i32, i32) {
    %c0_i32 = arith.constant 0 : i32
    %c0_i32_0 = arith.constant 0 : i32
    %c0_i32_1 = arith.constant 0 : i32
    return %c0_i32, %c0_i32_0 : i32, i32
  }
  func.func @transform_2(%arg0: i32) -> (i32, i32) {
    %c0_i32 = arith.constant 0 : i32
    %c0_i32_0 = arith.constant 0 : i32
    %c0_i32_1 = arith.constant 0 : i32
    return %c0_i32, %c0_i32_0 : i32, i32
  }
  func.func @transform_3(%arg0: i32) -> (i32, i32) {
    %c0_i32 = arith.constant 0 : i32
    %c0_i32_0 = arith.constant 0 : i32
    %c0_i32_1 = arith.constant 0 : i32
    return %c0_i32, %c0_i32_0 : i32, i32
  }
  func.func @transform_4(%arg0: i32) -> (i32, i32) {
    %c0_i32 = arith.constant 0 : i32
    %c0_i32_0 = arith.constant 0 : i32
    %c0_i32_1 = arith.constant 0 : i32
    return %c0_i32, %c0_i32_0 : i32, i32
  }
  func.func @transform_5(%arg0: i32) -> (i32, i32) {
    %c0_i32 = arith.constant 0 : i32
    %c0_i32_0 = arith.constant 0 : i32
    %c0_i32_1 = arith.constant 0 : i32
    return %c0_i32, %c0_i32_0 : i32, i32
  }
}

</mosaic_0001>

<llo_original>
// kernel: dqn_forward.4
$region0: #{dqn_forward.4}
  #allocation0 [shape = 'u32[]', space=smem, size = 0x4, offset = 0x4, fixed_abs, tag = 'smem constant byte address 0x4 - core index']
  #allocation1 [shape = 'u32[144,128]{1,0:T(1,128)}', space=vmem, size = 0x12000, scoped, tag = 'internal scratch']
  %s0 = inlined_call_operand.vmem [shape: f32[288,256], index: 0, kind: input, shape index: {}]
  %s1 = inlined_call_operand.vmem [shape: f32[256,32], index: 1, kind: input, shape index: {}]
  %s2 = inlined_call_operand.vmem [shape: f32[1,32], index: 2, kind: input, shape index: {}]
  %s3 = inlined_call_operand.vmem [shape: f32[288,32], index: 3, kind: output, shape index: {}]
  %s4 = sld [smem:[#allocation0]]
  $region22: #{dqn_forward.4} parent=0
    _
  %s6 = ssub.s32 1, %s4
  %s7 = scalar_select 0, %s6, %s4
  // Predicated region
  $region2: #{dqn_forward.4} parent=0 // pred_check
    _
  $region3: #{dqn_forward.4} parent=0 // pred_check_branch
    %9 = sbr.rel (0) target = $region5
  $region4: #{dqn_forward.4} parent=0 // pred_region
    _
  $region5: #{dqn_forward.4} parent=0 // pred_fallthru
    _
  // Predicated region
  $region6: #{dqn_forward.4} parent=0 // pred_check
    _
  $region7: #{dqn_forward.4} parent=0 // pred_check_branch
    %11 = sbr.rel (0) target = $region9
  $region8: #{dqn_forward.4} parent=0 // pred_region
    _
  $region9: #{dqn_forward.4} parent=0 // pred_fallthru
    _
  // Predicated region
  $region10: #{dqn_forward.4} parent=0 // pred_check
    _
  $region11: #{dqn_forward.4} parent=0 // pred_check_branch
    %13 = sbr.rel (0) target = $region13
  $region12: #{dqn_forward.4} parent=0 // pred_region
    _
  $region13: #{dqn_forward.4} parent=0 // pred_fallthru
    _
  %v14 = vld [vmem:[%s0] sm:$0xff]
  %v15 = vld [vmem:[%s0 + $0x8] sm:$0xff]
  %v16 = vld [vmem:[%s0 + $0x10] sm:$0xff]
  %v17 = vld [vmem:[%s0 + $0x18] sm:$0xff]
  %v18 = vld [vmem:[%s0 + $0x20] sm:$0xff]
  %v19 = vld [vmem:[%s0 + $0x28] sm:$0xff]
  %v20 = vld [vmem:[%s0 + $0x30] sm:$0xff]
  %v21 = vld [vmem:[%s0 + $0x38] sm:$0xff]
  %v22 = vld [vmem:[%s0 + $0x40] sm:$0xff]
  %v23 = vld [vmem:[%s0 + $0x48] sm:$0xff]
  %v24 = vld [vmem:[%s0 + $0x50] sm:$0xff]
  %v25 = vld [vmem:[%s0 + $0x58] sm:$0xff]
  %v26 = vld [vmem:[%s0 + $0x60] sm:$0xff]
  %v27 = vld [vmem:[%s0 + $0x68] sm:$0xff]
  %v28 = vld [vmem:[%s0 + $0x70] sm:$0xff]
  %v29 = vld [vmem:[%s0 + $0x78] sm:$0xff]
  %v30 = vld [vmem:[%s0 + $0x80] sm:$0xff]
  %v31 = vld [vmem:[%s0 + $0x88] sm:$0xff]
  %v32 = vld [vmem:[%s0 + $0x90] sm:$0xff]
  %v33 = vld [vmem:[%s0 + $0x98] sm:$0xff]
  %v34 = vld [vmem:[%s0 + $0xa0] sm:$0xff]
  %v35 = vld [vmem:[%s0 + $0xa8] sm:$0xff]
  %v36 = vld [vmem:[%s0 + $0xb0] sm:$0xff]
  %v37 = vld [vmem:[%s0 + $0xb8] sm:$0xff]
  %v38 = vld [vmem:[%s0 + $0xc0] sm:$0xff]
  %v39 = vld [vmem:[%s0 + $0xc8] sm:$0xff]
  %v40 = vld [vmem:[%s0 + $0xd0] sm:$0xff]
  %v41 = vld [vmem:[%s0 + $0xd8] sm:$0xff]
  %v42 = vld [vmem:[%s0 + $0xe0] sm:$0xff]
  %v43 = vld [vmem:[%s0 + $0xe8] sm:$0xff]
  %v44 = vld [vmem:[%s0 + $0xf0] sm:$0xff]
  %v45 = vld [vmem:[%s0 + $0xf8] sm:$0xff]
  %v46 = vld [vmem:[%s0 + $0x100] sm:$0xff]
  %v47 = vld [vmem:[%s0 + $0x108] sm:$0xff]
  %v48 = vld [vmem:[%s0 + $0x110] sm:$0xff]
  %v49 = vld [vmem:[%s0 + $0x118] sm:$0xff]
  %v50 = vld [vmem:[%s0 + $0x120] sm:$0xff]
  %v51 = vld [vmem:[%s0 + $0x128] sm:$0xff]
  %v52 = vld [vmem:[%s0 + $0x130] sm:$0xff]
  %v53 = vld [vmem:[%s0 + $0x138] sm:$0xff]
  %v54 = vld [vmem:[%s0 + $0x140] sm:$0xff]
  %v55 = vld [vmem:[%s0 + $0x148] sm:$0xff]
  %v56 = vld [vmem:[%s0 + $0x150] sm:$0xff]
  %v57 = vld [vmem:[%s0 + $0x158] sm:$0xff]
  %v58 = vld [vmem:[%s0 + $0x160] sm:$0xff]
  %v59 = vld [vmem:[%s0 + $0x168] sm:$0xff]
  %v60 = vld [vmem:[%s0 + $0x170] sm:$0xff]
  %v61 = vld [vmem:[%s0 + $0x178] sm:$0xff]
  %v62 = vld [vmem:[%s0 + $0x180] sm:$0xff]
  %v63 = vld [vmem:[%s0 + $0x188] sm:$0xff]
  %v64 = vld [vmem:[%s0 + $0x190] sm:$0xff]
  %v65 = vld [vmem:[%s0 + $0x198] sm:$0xff]
  %v66 = vld [vmem:[%s0 + $0x1a0] sm:$0xff]
  %v67 = vld [vmem:[%s0 + $0x1a8] sm:$0xff]
  %v68 = vld [vmem:[%s0 + $0x1b0] sm:$0xff]
  %v69 = vld [vmem:[%s0 + $0x1b8] sm:$0xff]
  %v70 = vld [vmem:[%s0 + $0x1c0] sm:$0xff]
  %v71 = vld [vmem:[%s0 + $0x1c8] sm:$0xff]
  %v72 = vld [vmem:[%s0 + $0x1d0] sm:$0xff]
  %v73 = vld [vmem:[%s0 + $0x1d8] sm:$0xff]
  %v74 = vld [vmem:[%s0 + $0x1e0] sm:$0xff]
  %v75 = vld [vmem:[%s0 + $0x1e8] sm:$0xff]
  %v76 = vld [vmem:[%s0 + $0x1f0] sm:$0xff]
  %v77 = vld [vmem:[%s0 + $0x1f8] sm:$0xff]
  %v78 = vld [vmem:[%s0 + $0x200] sm:$0xff]
  %v79 = vld [vmem:[%s0 + $0x208] sm:$0xff]
  %v80 = vld [vmem:[%s0 + $0x210] sm:$0xff]
  %v81 = vld [vmem:[%s0 + $0x218] sm:$0xff]
  %v82 = vld [vmem:[%s0 + $0x220] sm:$0xff]
  %v83 = vld [vmem:[%s0 + $0x228] sm:$0xff]
  %v84 = vld [vmem:[%s0 + $0x230] sm:$0xff]
  %v85 = vld [vmem:[%s0 + $0x238] sm:$0xff]
  %v86 = vld [vmem:[%s1] sm:$0xff]
  %v87 = vld [vmem:[%s1 + $0x8] sm:$0xff]
  %v88 = vld [vmem:[%s1 + $0x10] sm:$0xff]
  %v89 = vld [vmem:[%s1 + $0x18] sm:$0xff]
  %v90 = vld [vmem:[%s1 + $0x20] sm:$0xff]
  %v91 = vld [vmem:[%s1 + $0x28] sm:$0xff]
  %v92 = vld [vmem:[%s1 + $0x30] sm:$0xff]
  %v93 = vld [vmem:[%s1 + $0x38] sm:$0xff]
  %v94 = vld [vmem:[%s1 + $0x40] sm:$0xff]
  %v95 = vld [vmem:[%s1 + $0x48] sm:$0xff]
  %v96 = vld [vmem:[%s1 + $0x50] sm:$0xff]
  %v97 = vld [vmem:[%s1 + $0x58] sm:$0xff]
  %v98 = vld [vmem:[%s1 + $0x60] sm:$0xff]
  %v99 = vld [vmem:[%s1 + $0x68] sm:$0xff]
  %v100 = vld [vmem:[%s1 + $0x70] sm:$0xff]
  %v101 = vld [vmem:[%s1 + $0x78] sm:$0xff]
  %v102 = vld [vmem:[%s1 + $0x80] sm:$0xff]
  %v103 = vld [vmem:[%s1 + $0x88] sm:$0xff]
  %v104 = vld [vmem:[%s1 + $0x90] sm:$0xff]
  %v105 = vld [vmem:[%s1 + $0x98] sm:$0xff]
  %v106 = vld [vmem:[%s1 + $0xa0] sm:$0xff]
  %v107 = vld [vmem:[%s1 + $0xa8] sm:$0xff]
  %v108 = vld [vmem:[%s1 + $0xb0] sm:$0xff]
  %v109 = vld [vmem:[%s1 + $0xb8] sm:$0xff]
  %v110 = vld [vmem:[%s1 + $0xc0] sm:$0xff]
  %v111 = vld [vmem:[%s1 + $0xc8] sm:$0xff]
  %v112 = vld [vmem:[%s1 + $0xd0] sm:$0xff]
  %v113 = vld [vmem:[%s1 + $0xd8] sm:$0xff]
  %v114 = vld [vmem:[%s1 + $0xe0] sm:$0xff]
  %v115 = vld [vmem:[%s1 + $0xe8] sm:$0xff]
  %v116 = vld [vmem:[%s1 + $0xf0] sm:$0xff]
  %v117 = vld [vmem:[%s1 + $0xf8] sm:$0xff]
  %v118 = vld [vmem:[%s2] sm:$0x1]
  %v120 = vlaneseq
  %v121 = vshrl.u32 %v120, 7
  %v122 = vsub.s32 0, %v121
  %v123 = vrot.slane %v118, %v122
  %125 = vmatprep.subr.mxu0 0.0
  %126 = vmatpush1.msra.mxu0 %v101
  %127 = vmatprep.subr.mxu0 0.0
  %128 = vmatpush1.msra.mxu0 %v100
  %129 = vmatprep.subr.mxu0 0.0
  %130 = vmatpush1.msra.mxu0 %v99
  %131 = vmatprep.subr.mxu0 0.0
  %132 = vmatpush1.msra.mxu0 %v98
  %133 = vmatprep.subr.mxu0 0.0
  %134 = vmatpush1.msra.mxu0 %v97
  %135 = vmatprep.subr.mxu0 0.0
  %136 = vmatpush1.msra.mxu0 %v96
  %137 = vmatprep.subr.mxu0 0.0
  %138 = vmatpush1.msra.mxu0 %v95
  %139 = vmatprep.subr.mxu0 0.0
  %140 = vmatpush1.msra.mxu0 %v94
  %141 = vmatprep.subr.mxu0 0.0
  %142 = vmatpush1.msra.mxu0 %v93
  %143 = vmatprep.subr.mxu0 0.0
  %144 = vmatpush1.msra.mxu0 %v92
  %145 = vmatprep.subr.mxu0 0.0
  %146 = vmatpush1.msra.mxu0 %v91
  %147 = vmatprep.subr.mxu0 0.0
  %148 = vmatpush1.msra.mxu0 %v90
  %149 = vmatprep.subr.mxu0 0.0
  %150 = vmatpush1.msra.mxu0 %v89
  %151 = vmatprep.subr.mxu0 0.0
  %152 = vmatpush1.msra.mxu0 %v88
  %153 = vmatprep.subr.mxu0 0.0
  %154 = vmatpush1.msra.mxu0 %v87
  %155 = vmatprep.subr.mxu0 0.0
  %156 = vmatpush1.msra.mxu0 %v86
  %157 = vmatprep.subr.mxu0 0.0
  %158 = vmatpush2.msra.mxu0 %v117
  %159 = vmatprep.subr.mxu0 0.0
  %160 = vmatpush2.msra.mxu0 %v116
  %161 = vmatprep.subr.mxu0 0.0
  %162 = vmatpush2.msra.mxu0 %v115
  %163 = vmatprep.subr.mxu0 0.0
  %164 = vmatpush2.msra.mxu0 %v114
  %165 = vmatprep.subr.mxu0 0.0
  %166 = vmatpush2.msra.mxu0 %v113
  %167 = vmatprep.subr.mxu0 0.0
  %168 = vmatpush2.msra.mxu0 %v112
  %169 = vmatprep.subr.mxu0 0.0
  %170 = vmatpush2.msra.mxu0 %v111
  %171 = vmatprep.subr.mxu0 0.0
  %172 = vmatpush2.msra.mxu0 %v110
  %173 = vmatprep.subr.mxu0 0.0
  %174 = vmatpush2.msra.mxu0 %v109
  %175 = vmatprep.subr.mxu0 0.0
  %176 = vmatpush2.msra.mxu0 %v108
  %177 = vmatprep.subr.mxu0 0.0
  %178 = vmatpush2.msra.mxu0 %v107
  %179 = vmatprep.subr.mxu0 0.0
  %180 = vmatpush2.msra.mxu0 %v106
  %181 = vmatprep.subr.mxu0 0.0
  %182 = vmatpush2.msra.mxu0 %v105
  %183 = vmatprep.subr.mxu0 0.0
  %184 = vmatpush2.msra.mxu0 %v104
  %185 = vmatprep.subr.mxu0 0.0
  %186 = vmatpush2.msra.mxu0 %v103
  %187 = vmatprep.subr.mxu0 0.0
  %188 = vmatpush2.msra.mxu0 %v102
  %189 = vmatprep.mubr.f32.mxu0 %v15
  %190 = vmatmul.mubr.f32.gmra.mxu0 %v14
  %v191 = vpop.f32.mrf.mxu0
  %v192 = vadd.f32 %v123, %v191
  %v193 = vpop.f32.mrf.mxu0
  %194 = vmatprep.mubr.f32.mxu0 %v17
  %195 = vmatmul.mubr.f32.gmra.mxu0 %v16
  %v196 = vpop.f32.mrf.mxu0
  %v197 = vadd.f32 %v123, %v196
  %v198 = vpop.f32.mrf.mxu0
  %199 = vmatprep.mubr.f32.mxu0 %v19
  %200 = vmatmul.mubr.f32.gmra.mxu0 %v18
  %v201 = vpop.f32.mrf.mxu0
  %v202 = vadd.f32 %v123, %v201
  %v203 = vpop.f32.mrf.mxu0
  %204 = vmatprep.mubr.f32.mxu0 %v21
  %205 = vmatmul.mubr.f32.gmra.mxu0 %v20
  %v206 = vpop.f32.mrf.mxu0
  %v207 = vadd.f32 %v123, %v206
  %v208 = vpop.f32.mrf.mxu0
  %209 = vmatprep.mubr.f32.mxu0 %v23
  %210 = vmatmul.mubr.f32.gmra.mxu0 %v22
  %v211 = vpop.f32.mrf.mxu0
  %v212 = vadd.f32 %v123, %v211
  %v213 = vpop.f32.mrf.mxu0
  %214 = vmatprep.mubr.f32.mxu0 %v25
  %215 = vmatmul.mubr.f32.gmra.mxu0 %v24
  %v216 = vpop.f32.mrf.mxu0
  %v217 = vadd.f32 %v123, %v216
  %v218 = vpop.f32.mrf.mxu0
  %219 = vmatprep.mubr.f32.mxu0 %v27
  %220 = vmatmul.mubr.f32.gmra.mxu0 %v26
  %v221 = vpop.f32.mrf.mxu0
  %v222 = vadd.f32 %v123, %v221
  %v223 = vpop.f32.mrf.mxu0
  %224 = vmatprep.mubr.f32.mxu0 %v29
  %225 = vmatmul.mubr.f32.gmra.mxu0 %v28
  %v226 = vpop.f32.mrf.mxu0
  %v227 = vadd.f32 %v123, %v226
  %v228 = vpop.f32.mrf.mxu0
  %229 = vmatprep.mubr.f32.mxu0 %v31
  %230 = vmatmul.mubr.f32.gmra.mxu0 %v30
  %v231 = vpop.f32.mrf.mxu0
  %v232 = vadd.f32 %v123, %v231
  %v233 = vpop.f32.mrf.mxu0
  %234 = vmatprep.mubr.f32.mxu0 %v33
  %235 = vmatmul.mubr.f32.gmra.mxu0 %v32
  %v236 = vpop.f32.mrf.mxu0
  %v237 = vadd.f32 %v123, %v236
  %v238 = vpop.f32.mrf.mxu0
  %239 = vmatprep.mubr.f32.mxu0 %v35
  %240 = vmatmul.mubr.f32.gmra.mxu0 %v34
  %v241 = vpop.f32.mrf.mxu0
  %v242 = vadd.f32 %v123, %v241
  %v243 = vpop.f32.mrf.mxu0
  %244 = vmatprep.mubr.f32.mxu0 %v37
  %245 = vmatmul.mubr.f32.gmra.mxu0 %v36
  %v246 = vpop.f32.mrf.mxu0
  %v247 = vadd.f32 %v123, %v246
  %v248 = vpop.f32.mrf.mxu0
  %249 = vmatprep.mubr.f32.mxu0 %v39
  %250 = vmatmul.mubr.f32.gmra.mxu0 %v38
  %v251 = vpop.f32.mrf.mxu0
  %v252 = vadd.f32 %v123, %v251
  %v253 = vpop.f32.mrf.mxu0
  %254 = vmatprep.mubr.f32.mxu0 %v41
  %255 = vmatmul.mubr.f32.gmra.mxu0 %v40
  %v256 = vpop.f32.mrf.mxu0
  %v257 = vadd.f32 %v123, %v256
  %v258 = vpop.f32.mrf.mxu0
  %259 = vmatprep.mubr.f32.mxu0 %v43
  %260 = vmatmul.mubr.f32.gmra.mxu0 %v42
  %v261 = vpop.f32.mrf.mxu0
  %v262 = vadd.f32 %v123, %v261
  %v263 = vpop.f32.mrf.mxu0
  %264 = vmatprep.mubr.f32.mxu0 %v45
  %265 = vmatmul.mubr.f32.gmra.mxu0 %v44
  %v266 = vpop.f32.mrf.mxu0
  %v267 = vadd.f32 %v123, %v266
  %v268 = vpop.f32.mrf.mxu0
  %269 = vmatprep.mubr.f32.mxu0 %v47
  %270 = vmatmul.mubr.f32.gmra.mxu0 %v46
  %v271 = vpop.f32.mrf.mxu0
  %v272 = vadd.f32 %v123, %v271
  %v273 = vpop.f32.mrf.mxu0
  %274 = vmatprep.mubr.f32.mxu0 %v49
  %275 = vmatmul.mubr.f32.gmra.mxu0 %v48
  %v276 = vpop.f32.mrf.mxu0
  %v277 = vadd.f32 %v123, %v276
  %v278 = vpop.f32.mrf.mxu0
  %279 = vmatprep.mubr.f32.mxu0 %v51
  %280 = vmatmul.mubr.f32.gmra.mxu0 %v50
  %v281 = vpop.f32.mrf.mxu0
  %v282 = vadd.f32 %v123, %v281
  %v283 = vpop.f32.mrf.mxu0
  %284 = vmatprep.mubr.f32.mxu0 %v53
  %285 = vmatmul.mubr.f32.gmra.mxu0 %v52
  %v286 = vpop.f32.mrf.mxu0
  %v287 = vadd.f32 %v123, %v286
  %v288 = vpop.f32.mrf.mxu0
  %289 = vmatprep.mubr.f32.mxu0 %v55
  %290 = vmatmul.mubr.f32.gmra.mxu0 %v54
  %v291 = vpop.f32.mrf.mxu0
  %v292 = vadd.f32 %v123, %v291
  %v293 = vpop.f32.mrf.mxu0
  %294 = vmatprep.mubr.f32.mxu0 %v57
  %295 = vmatmul.mubr.f32.gmra.mxu0 %v56
  %v296 = vpop.f32.mrf.mxu0
  %v297 = vadd.f32 %v123, %v296
  %v298 = vpop.f32.mrf.mxu0
  %299 = vmatprep.mubr.f32.mxu0 %v59
  %300 = vmatmul.mubr.f32.gmra.mxu0 %v58
  %v301 = vpop.f32.mrf.mxu0
  %v302 = vadd.f32 %v123, %v301
  %v303 = vpop.f32.mrf.mxu0
  %304 = vmatprep.mubr.f32.mxu0 %v61
  %305 = vmatmul.mubr.f32.gmra.mxu0 %v60
  %v306 = vpop.f32.mrf.mxu0
  %v307 = vadd.f32 %v123, %v306
  %v308 = vpop.f32.mrf.mxu0
  %309 = vmatprep.mubr.f32.mxu0 %v63
  %310 = vmatmul.mubr.f32.gmra.mxu0 %v62
  %v311 = vpop.f32.mrf.mxu0
  %v312 = vadd.f32 %v123, %v311
  %v313 = vpop.f32.mrf.mxu0
  %314 = vmatprep.mubr.f32.mxu0 %v65
  %315 = vmatmul.mubr.f32.gmra.mxu0 %v64
  %v316 = vpop.f32.mrf.mxu0
  %v317 = vadd.f32 %v123, %v316
  %v318 = vpop.f32.mrf.mxu0
  %319 = vmatprep.mubr.f32.mxu0 %v67
  %320 = vmatmul.mubr.f32.gmra.mxu0 %v66
  %v321 = vpop.f32.mrf.mxu0
  %v322 = vadd.f32 %v123, %v321
  %v323 = vpop.f32.mrf.mxu0
  %324 = vmatprep.mubr.f32.mxu0 %v69
  %325 = vmatmul.mubr.f32.gmra.mxu0 %v68
  %v326 = vpop.f32.mrf.mxu0
  %v327 = vadd.f32 %v123, %v326
  %v328 = vpop.f32.mrf.mxu0
  %329 = vmatprep.mubr.f32.mxu0 %v71
  %330 = vmatmul.mubr.f32.gmra.mxu0 %v70
  %v331 = vpop.f32.mrf.mxu0
  %v332 = vadd.f32 %v123, %v331
  %v333 = vpop.f32.mrf.mxu0
  %334 = vmatprep.mubr.f32.mxu0 %v73
  %335 = vmatmul.mubr.f32.gmra.mxu0 %v72
  %v336 = vpop.f32.mrf.mxu0
  %v337 = vadd.f32 %v123, %v336
  %v338 = vpop.f32.mrf.mxu0
  %339 = vmatprep.mubr.f32.mxu0 %v75
  %340 = vmatmul.mubr.f32.gmra.mxu0 %v74
  %v341 = vpop.f32.mrf.mxu0
  %v342 = vadd.f32 %v123, %v341
  %v343 = vpop.f32.mrf.mxu0
  %344 = vmatprep.mubr.f32.mxu0 %v77
  %345 = vmatmul.mubr.f32.gmra.mxu0 %v76
  %v346 = vpop.f32.mrf.mxu0
  %v347 = vadd.f32 %v123, %v346
  %v348 = vpop.f32.mrf.mxu0
  %349 = vmatprep.mubr.f32.mxu0 %v79
  %350 = vmatmul.mubr.f32.gmra.mxu0 %v78
  %v351 = vpop.f32.mrf.mxu0
  %v352 = vadd.f32 %v123, %v351
  %v353 = vpop.f32.mrf.mxu0
  %354 = vmatprep.mubr.f32.mxu0 %v81
  %355 = vmatmul.mubr.f32.gmra.mxu0 %v80
  %v356 = vpop.f32.mrf.mxu0
  %v357 = vadd.f32 %v123, %v356
  %v358 = vpop.f32.mrf.mxu0
  %359 = vmatprep.mubr.f32.mxu0 %v83
  %360 = vmatmul.mubr.f32.gmra.mxu0 %v82
  %v361 = vpop.f32.mrf.mxu0
  %v362 = vadd.f32 %v123, %v361
  %v363 = vpop.f32.mrf.mxu0
  %364 = vmatprep.mubr.f32.mxu0 %v85
  %365 = vmatmul.mubr.f32.gmra.mxu0 %v84
  %v366 = vpop.f32.mrf.mxu0
  %v367 = vadd.f32 %v123, %v366
  %v368 = vpop.f32.mrf.mxu0
  %369 = vdwg.mxu0
  %v370 = vmax.f32 %v192, 0.0
  %v371 = vmax.f32 %v197, 0.0
  %v372 = vmax.f32 %v202, 0.0
  %v373 = vmax.f32 %v207, 0.0
  %v374 = vmax.f32 %v212, 0.0
  %v375 = vmax.f32 %v217, 0.0
  %v376 = vmax.f32 %v222, 0.0
  %v377 = vmax.f32 %v227, 0.0
  %v378 = vmax.f32 %v232, 0.0
  %v379 = vmax.f32 %v237, 0.0
  %v380 = vmax.f32 %v242, 0.0
  %v381 = vmax.f32 %v247, 0.0
  %v382 = vmax.f32 %v252, 0.0
  %v383 = vmax.f32 %v257, 0.0
  %v384 = vmax.f32 %v262, 0.0
  %v385 = vmax.f32 %v267, 0.0
  %v386 = vmax.f32 %v272, 0.0
  %v387 = vmax.f32 %v277, 0.0
  %v388 = vmax.f32 %v282, 0.0
  %v389 = vmax.f32 %v287, 0.0
  %v390 = vmax.f32 %v292, 0.0
  %v391 = vmax.f32 %v297, 0.0
  %v392 = vmax.f32 %v302, 0.0
  %v393 = vmax.f32 %v307, 0.0
  %v394 = vmax.f32 %v312, 0.0
  %v395 = vmax.f32 %v317, 0.0
  %v396 = vmax.f32 %v322, 0.0
  %v397 = vmax.f32 %v327, 0.0
  %v398 = vmax.f32 %v332, 0.0
  %v399 = vmax.f32 %v337, 0.0
  %v400 = vmax.f32 %v342, 0.0
  %v401 = vmax.f32 %v347, 0.0
  %v402 = vmax.f32 %v352, 0.0
  %v403 = vmax.f32 %v357, 0.0
  %v404 = vmax.f32 %v362, 0.0
  %v405 = vmax.f32 %v367, 0.0
  %vm406 = vcmask 261120
  %407 = vst.msk [vmem:[%s3] sm:$0xff] %vm406, %v370
  %408 = vst.msk [vmem:[%s3 + $0x8] sm:$0xff] %vm406, %v371
  %409 = vst.msk [vmem:[%s3 + $0x10] sm:$0xff] %vm406, %v372
  %410 = vst.msk [vmem:[%s3 + $0x18] sm:$0xff] %vm406, %v373
  %411 = vst.msk [vmem:[%s3 + $0x20] sm:$0xff] %vm406, %v374
  %412 = vst.msk [vmem:[%s3 + $0x28] sm:$0xff] %vm406, %v375
  %413 = vst.msk [vmem:[%s3 + $0x30] sm:$0xff] %vm406, %v376
  %414 = vst.msk [vmem:[%s3 + $0x38] sm:$0xff] %vm406, %v377
  %415 = vst.msk [vmem:[%s3 + $0x40] sm:$0xff] %vm406, %v378
  %416 = vst.msk [vmem:[%s3 + $0x48] sm:$0xff] %vm406, %v379
  %417 = vst.msk [vmem:[%s3 + $0x50] sm:$0xff] %vm406, %v380
  %418 = vst.msk [vmem:[%s3 + $0x58] sm:$0xff] %vm406, %v381
  %419 = vst.msk [vmem:[%s3 + $0x60] sm:$0xff] %vm406, %v382
  %420 = vst.msk [vmem:[%s3 + $0x68] sm:$0xff] %vm406, %v383
  %421 = vst.msk [vmem:[%s3 + $0x70] sm:$0xff] %vm406, %v384
  %422 = vst.msk [vmem:[%s3 + $0x78] sm:$0xff] %vm406, %v385
  %423 = vst.msk [vmem:[%s3 + $0x80] sm:$0xff] %vm406, %v386
  %424 = vst.msk [vmem:[%s3 + $0x88] sm:$0xff] %vm406, %v387
  %425 = vst.msk [vmem:[%s3 + $0x90] sm:$0xff] %vm406, %v388
  %426 = vst.msk [vmem:[%s3 + $0x98] sm:$0xff] %vm406, %v389
  %427 = vst.msk [vmem:[%s3 + $0xa0] sm:$0xff] %vm406, %v390
  %428 = vst.msk [vmem:[%s3 + $0xa8] sm:$0xff] %vm406, %v391
  %429 = vst.msk [vmem:[%s3 + $0xb0] sm:$0xff] %vm406, %v392
  %430 = vst.msk [vmem:[%s3 + $0xb8] sm:$0xff] %vm406, %v393
  %431 = vst.msk [vmem:[%s3 + $0xc0] sm:$0xff] %vm406, %v394
  %432 = vst.msk [vmem:[%s3 + $0xc8] sm:$0xff] %vm406, %v395
  %433 = vst.msk [vmem:[%s3 + $0xd0] sm:$0xff] %vm406, %v396
  %434 = vst.msk [vmem:[%s3 + $0xd8] sm:$0xff] %vm406, %v397
  %435 = vst.msk [vmem:[%s3 + $0xe0] sm:$0xff] %vm406, %v398
  %436 = vst.msk [vmem:[%s3 + $0xe8] sm:$0xff] %vm406, %v399
  %437 = vst.msk [vmem:[%s3 + $0xf0] sm:$0xff] %vm406, %v400
  %438 = vst.msk [vmem:[%s3 + $0xf8] sm:$0xff] %vm406, %v401
  %439 = vst.msk [vmem:[%s3 + $0x100] sm:$0xff] %vm406, %v402
  %440 = vst.msk [vmem:[%s3 + $0x108] sm:$0xff] %vm406, %v403
  %441 = vst.msk [vmem:[%s3 + $0x110] sm:$0xff] %vm406, %v404
  %442 = vst.msk [vmem:[%s3 + $0x118] sm:$0xff] %vm406, %v405
  // Predicated region
  $region14: #{dqn_forward.4} parent=0 // pred_check
    _
  $region15: #{dqn_forward.4} parent=0 // pred_check_branch
    %444 = sbr.rel (0) target = $region17
  $region16: #{dqn_forward.4} parent=0 // pred_region
    _
  $region17: #{dqn_forward.4} parent=0 // pred_fallthru
    _
  // Predicated region
  $region18: #{dqn_forward.4} parent=0 // pred_check
    _
  $region19: #{dqn_forward.4} parent=0 // pred_check_branch
    %446 = sbr.rel (0) target = $region21
  $region20: #{dqn_forward.4} parent=0 // pred_region
    _
  $region21: #{dqn_forward.4} parent=0 // pred_fallthru
    _

// kernel: dqn_forward.5
$region0: #{dqn_forward.5}
  #allocation0 [shape = 'u32[]', space=smem, size = 0x4, offset = 0x4, fixed_abs, tag = 'smem constant byte address 0x4 - core index']
  #allocation1 [shape = 'u32[144,128]{1,0:T(1,128)}', space=vmem, size = 0x12000, scoped, tag = 'internal scratch']
  %s0 = inlined_call_operand.vmem [shape: f32[56,512], index: 0, kind: input, shape index: {}]
  %s1 = inlined_call_operand.vmem [shape: f32[512,64], index: 1, kind: input, shape index: {}]
  %s2 = inlined_call_operand.vmem [shape: f32[1,64], index: 2, kind: input, shape index: {}]
  %s3 = inlined_call_operand.vmem [shape: f32[56,64], index: 3, kind: output, shape index: {}]
  %s4 = sld [smem:[#allocation0]]
  $region22: #{dqn_forward.5} parent=0
    _
  %s6 = ssub.s32 1, %s4
  %s7 = scalar_select 0, %s6, %s4
  // Predicated region
  $region2: #{dqn_forward.5} parent=0 // pred_check
    _
  $region3: #{dqn_forward.5} parent=0 // pred_check_branch
    %9 = sbr.rel (0) target = $region5
  $region4: #{dqn_forward.5} parent=0 // pred_region
    _
  $region5: #{dqn_forward.5} parent=0 // pred_fallthru
    _
  // Predicated region
  $region6: #{dqn_forward.5} parent=0 // pred_check
    _
  $region7: #{dqn_forward.5} parent=0 // pred_check_branch
    %11 = sbr.rel (0) target = $region9
  $region8: #{dqn_forward.5} parent=0 // pred_region
    _
  $region9: #{dqn_forward.5} parent=0 // pred_fallthru
    _
  // Predicated region
  $region10: #{dqn_forward.5} parent=0 // pred_check
    _
  $region11: #{dqn_forward.5} parent=0 // pred_check_branch
    %13 = sbr.rel (0) target = $region13
  $region12: #{dqn_forward.5} parent=0 // pred_region
    _
  $region13: #{dqn_forward.5} parent=0 // pred_fallthru
    _
  %v14 = vld [vmem:[%s0] sm:$0xff]
  %v15 = vld [vmem:[%s0 + $0x8] sm:$0xff]
  %v16 = vld [vmem:[%s0 + $0x10] sm:$0xff]
  %v17 = vld [vmem:[%s0 + $0x18] sm:$0xff]
  %v18 = vld [vmem:[%s0 + $0x20] sm:$0xff]
  %v19 = vld [vmem:[%s0 + $0x28] sm:$0xff]
  %v20 = vld [vmem:[%s0 + $0x30] sm:$0xff]
  %v21 = vld [vmem:[%s0 + $0x38] sm:$0xff]
  %v22 = vld [vmem:[%s0 + $0x40] sm:$0xff]
  %v23 = vld [vmem:[%s0 + $0x48] sm:$0xff]
  %v24 = vld [vmem:[%s0 + $0x50] sm:$0xff]
  %v25 = vld [vmem:[%s0 + $0x58] sm:$0xff]
  %v26 = vld [vmem:[%s0 + $0x60] sm:$0xff]
  %v27 = vld [vmem:[%s0 + $0x68] sm:$0xff]
  %v28 = vld [vmem:[%s0 + $0x70] sm:$0xff]
  %v29 = vld [vmem:[%s0 + $0x78] sm:$0xff]
  %v30 = vld [vmem:[%s0 + $0x80] sm:$0xff]
  %v31 = vld [vmem:[%s0 + $0x88] sm:$0xff]
  %v32 = vld [vmem:[%s0 + $0x90] sm:$0xff]
  %v33 = vld [vmem:[%s0 + $0x98] sm:$0xff]
  %v34 = vld [vmem:[%s0 + $0xa0] sm:$0xff]
  %v35 = vld [vmem:[%s0 + $0xa8] sm:$0xff]
  %v36 = vld [vmem:[%s0 + $0xb0] sm:$0xff]
  %v37 = vld [vmem:[%s0 + $0xb8] sm:$0xff]
  %v38 = vld [vmem:[%s0 + $0xc0] sm:$0xff]
  %v39 = vld [vmem:[%s0 + $0xc8] sm:$0xff]
  %v40 = vld [vmem:[%s0 + $0xd0] sm:$0xff]
  %v41 = vld [vmem:[%s0 + $0xd8] sm:$0xff]
  %v42 = vld [vmem:[%s1] sm:$0xff]
  %v43 = vld [vmem:[%s1 + $0x8] sm:$0xff]
  %v44 = vld [vmem:[%s1 + $0x10] sm:$0xff]
  %v45 = vld [vmem:[%s1 + $0x18] sm:$0xff]
  %v46 = vld [vmem:[%s1 + $0x20] sm:$0xff]
  %v47 = vld [vmem:[%s1 + $0x28] sm:$0xff]
  %v48 = vld [vmem:[%s1 + $0x30] sm:$0xff]
  %v49 = vld [vmem:[%s1 + $0x38] sm:$0xff]
  %v50 = vld [vmem:[%s1 + $0x40] sm:$0xff]
  %v51 = vld [vmem:[%s1 + $0x48] sm:$0xff]
  %v52 = vld [vmem:[%s1 + $0x50] sm:$0xff]
  %v53 = vld [vmem:[%s1 + $0x58] sm:$0xff]
  %v54 = vld [vmem:[%s1 + $0x60] sm:$0xff]
  %v55 = vld [vmem:[%s1 + $0x68] sm:$0xff]
  %v56 = vld [vmem:[%s1 + $0x70] sm:$0xff]
  %v57 = vld [vmem:[%s1 + $0x78] sm:$0xff]
  %v58 = vld [vmem:[%s1 + $0x80] sm:$0xff]
  %v59 = vld [vmem:[%s1 + $0x88] sm:$0xff]
  %v60 = vld [vmem:[%s1 + $0x90] sm:$0xff]
  %v61 = vld [vmem:[%s1 + $0x98] sm:$0xff]
  %v62 = vld [vmem:[%s1 + $0xa0] sm:$0xff]
  %v63 = vld [vmem:[%s1 + $0xa8] sm:$0xff]
  %v64 = vld [vmem:[%s1 + $0xb0] sm:$0xff]
  %v65 = vld [vmem:[%s1 + $0xb8] sm:$0xff]
  %v66 = vld [vmem:[%s1 + $0xc0] sm:$0xff]
  %v67 = vld [vmem:[%s1 + $0xc8] sm:$0xff]
  %v68 = vld [vmem:[%s1 + $0xd0] sm:$0xff]
  %v69 = vld [vmem:[%s1 + $0xd8] sm:$0xff]
  %v70 = vld [vmem:[%s1 + $0xe0] sm:$0xff]
  %v71 = vld [vmem:[%s1 + $0xe8] sm:$0xff]
  %v72 = vld [vmem:[%s1 + $0xf0] sm:$0xff]
  %v73 = vld [vmem:[%s1 + $0xf8] sm:$0xff]
  %v74 = vld [vmem:[%s1 + $0x100] sm:$0xff]
  %v75 = vld [vmem:[%s1 + $0x108] sm:$0xff]
  %v76 = vld [vmem:[%s1 + $0x110] sm:$0xff]
  %v77 = vld [vmem:[%s1 + $0x118] sm:$0xff]
  %v78 = vld [vmem:[%s1 + $0x120] sm:$0xff]
  %v79 = vld [vmem:[%s1 + $0x128] sm:$0xff]
  %v80 = vld [vmem:[%s1 + $0x130] sm:$0xff]
  %v81 = vld [vmem:[%s1 + $0x138] sm:$0xff]
  %v82 = vld [vmem:[%s1 + $0x140] sm:$0xff]
  %v83 = vld [vmem:[%s1 + $0x148] sm:$0xff]
  %v84 = vld [vmem:[%s1 + $0x150] sm:$0xff]
  %v85 = vld [vmem:[%s1 + $0x158] sm:$0xff]
  %v86 = vld [vmem:[%s1 + $0x160] sm:$0xff]
  %v87 = vld [vmem:[%s1 + $0x168] sm:$0xff]
  %v88 = vld [vmem:[%s1 + $0x170] sm:$0xff]
  %v89 = vld [vmem:[%s1 + $0x178] sm:$0xff]
  %v90 = vld [vmem:[%s1 + $0x180] sm:$0xff]
  %v91 = vld [vmem:[%s1 + $0x188] sm:$0xff]
  %v92 = vld [vmem:[%s1 + $0x190] sm:$0xff]
  %v93 = vld [vmem:[%s1 + $0x198] sm:$0xff]
  %v94 = vld [vmem:[%s1 + $0x1a0] sm:$0xff]
  %v95 = vld [vmem:[%s1 + $0x1a8] sm:$0xff]
  %v96 = vld [vmem:[%s1 + $0x1b0] sm:$0xff]
  %v97 = vld [vmem:[%s1 + $0x1b8] sm:$0xff]
  %v98 = vld [vmem:[%s1 + $0x1c0] sm:$0xff]
  %v99 = vld [vmem:[%s1 + $0x1c8] sm:$0xff]
  %v100 = vld [vmem:[%s1 + $0x1d0] sm:$0xff]
  %v101 = vld [vmem:[%s1 + $0x1d8] sm:$0xff]
  %v102 = vld [vmem:[%s1 + $0x1e0] sm:$0xff]
  %v103 = vld [vmem:[%s1 + $0x1e8] sm:$0xff]
  %v104 = vld [vmem:[%s1 + $0x1f0] sm:$0xff]
  %v105 = vld [vmem:[%s1 + $0x1f8] sm:$0xff]
  %v106 = vld [vmem:[%s2] sm:$0x1]
  %v108 = vlaneseq
  %v109 = vshrl.u32 %v108, 7
  %v110 = vsub.s32 0, %v109
  %v111 = vrot.slane %v106, %v110
  %113 = vmatprep.subr.mxu0 0.0
  %114 = vmatpush1.msra.mxu0 %v57
  %115 = vmatprep.subr.mxu0 0.0
  %116 = vmatpush1.msra.mxu0 %v56
  %117 = vmatprep.subr.mxu0 0.0
  %118 = vmatpush1.msra.mxu0 %v55
  %119 = vmatprep.subr.mxu0 0.0
  %120 = vmatpush1.msra.mxu0 %v54
  %121 = vmatprep.subr.mxu0 0.0
  %122 = vmatpush1.msra.mxu0 %v53
  %123 = vmatprep.subr.mxu0 0.0
  %124 = vmatpush1.msra.mxu0 %v52
  %125 = vmatprep.subr.mxu0 0.0
  %126 = vmatpush1.msra.mxu0 %v51
  %127 = vmatprep.subr.mxu0 0.0
  %128 = vmatpush1.msra.mxu0 %v50
  %129 = vmatprep.subr.mxu0 0.0
  %130 = vmatpush1.msra.mxu0 %v49
  %131 = vmatprep.subr.mxu0 0.0
  %132 = vmatpush1.msra.mxu0 %v48
  %133 = vmatprep.subr.mxu0 0.0
  %134 = vmatpush1.msra.mxu0 %v47
  %135 = vmatprep.subr.mxu0 0.0
  %136 = vmatpush1.msra.mxu0 %v46
  %137 = vmatprep.subr.mxu0 0.0
  %138 = vmatpush1.msra.mxu0 %v45
  %139 = vmatprep.subr.mxu0 0.0
  %140 = vmatpush1.msra.mxu0 %v44
  %141 = vmatprep.subr.mxu0 0.0
  %142 = vmatpush1.msra.mxu0 %v43
  %143 = vmatprep.subr.mxu0 0.0
  %144 = vmatpush1.msra.mxu0 %v42
  %145 = vmatprep.subr.mxu0 0.0
  %146 = vmatpush2.msra.mxu0 %v73
  %147 = vmatprep.subr.mxu0 0.0
  %148 = vmatpush2.msra.mxu0 %v72
  %149 = vmatprep.subr.mxu0 0.0
  %150 = vmatpush2.msra.mxu0 %v71
  %151 = vmatprep.subr.mxu0 0.0
  %152 = vmatpush2.msra.mxu0 %v70
  %153 = vmatprep.subr.mxu0 0.0
  %154 = vmatpush2.msra.mxu0 %v69
  %155 = vmatprep.subr.mxu0 0.0
  %156 = vmatpush2.msra.mxu0 %v68
  %157 = vmatprep.subr.mxu0 0.0
  %158 = vmatpush2.msra.mxu0 %v67
  %159 = vmatprep.subr.mxu0 0.0
  %160 = vmatpush2.msra.mxu0 %v66
  %161 = vmatprep.subr.mxu0 0.0
  %162 = vmatpush2.msra.mxu0 %v65
  %163 = vmatprep.subr.mxu0 0.0
  %164 = vmatpush2.msra.mxu0 %v64
  %165 = vmatprep.subr.mxu0 0.0
  %166 = vmatpush2.msra.mxu0 %v63
  %167 = vmatprep.subr.mxu0 0.0
  %168 = vmatpush2.msra.mxu0 %v62
  %169 = vmatprep.subr.mxu0 0.0
  %170 = vmatpush2.msra.mxu0 %v61
  %171 = vmatprep.subr.mxu0 0.0
  %172 = vmatpush2.msra.mxu0 %v60
  %173 = vmatprep.subr.mxu0 0.0
  %174 = vmatpush2.msra.mxu0 %v59
  %175 = vmatprep.subr.mxu0 0.0
  %176 = vmatpush2.msra.mxu0 %v58
  %177 = vmatprep.mubr.f32.mxu0 %v15
  %178 = vmatmul.mubr.f32.gmra.mxu0 %v14
  %v179 = vpop.f32.mrf.mxu0
  %v180 = vadd.f32 %v111, %v179
  %v181 = vpop.f32.mrf.mxu0
  %182 = vmatprep.mubr.f32.mxu0 %v19
  %183 = vmatmul.mubr.f32.gmra.mxu0 %v18
  %v184 = vpop.f32.mrf.mxu0
  %v185 = vadd.f32 %v111, %v184
  %v186 = vpop.f32.mrf.mxu0
  %187 = vmatprep.mubr.f32.mxu0 %v23
  %188 = vmatmul.mubr.f32.gmra.mxu0 %v22
  %v189 = vpop.f32.mrf.mxu0
  %v190 = vadd.f32 %v111, %v189
  %v191 = vpop.f32.mrf.mxu0
  %192 = vmatprep.mubr.f32.mxu0 %v27
  %193 = vmatmul.mubr.f32.gmra.mxu0 %v26
  %v194 = vpop.f32.mrf.mxu0
  %v195 = vadd.f32 %v111, %v194
  %v196 = vpop.f32.mrf.mxu0
  %197 = vmatprep.mubr.f32.mxu0 %v31
  %198 = vmatmul.mubr.f32.gmra.mxu0 %v30
  %v199 = vpop.f32.mrf.mxu0
  %v200 = vadd.f32 %v111, %v199
  %v201 = vpop.f32.mrf.mxu0
  %202 = vmatprep.mubr.f32.mxu0 %v35
  %203 = vmatmul.mubr.f32.gmra.mxu0 %v34
  %v204 = vpop.f32.mrf.mxu0
  %v205 = vadd.f32 %v111, %v204
  %v206 = vpop.f32.mrf.mxu0
  %207 = vmatprep.mubr.f32.mxu0 %v39
  %208 = vmatmul.mubr.f32.gmra.mxu0 %v38
  %v209 = vpop.f32.mrf.mxu0
  %v210 = vadd.f32 %v111, %v209
  %v211 = vpop.f32.mrf.mxu0
  %212 = vdwg.mxu0
  %213 = vmatprep.subr.mxu0 0.0
  %214 = vmatpush1.msra.mxu0 %v89
  %215 = vmatprep.subr.mxu0 0.0
  %216 = vmatpush1.msra.mxu0 %v88
  %217 = vmatprep.subr.mxu0 0.0
  %218 = vmatpush1.msra.mxu0 %v87
  %219 = vmatprep.subr.mxu0 0.0
  %220 = vmatpush1.msra.mxu0 %v86
  %221 = vmatprep.subr.mxu0 0.0
  %222 = vmatpush1.msra.mxu0 %v85
  %223 = vmatprep.subr.mxu0 0.0
  %224 = vmatpush1.msra.mxu0 %v84
  %225 = vmatprep.subr.mxu0 0.0
  %226 = vmatpush1.msra.mxu0 %v83
  %227 = vmatprep.subr.mxu0 0.0
  %228 = vmatpush1.msra.mxu0 %v82
  %229 = vmatprep.subr.mxu0 0.0
  %230 = vmatpush1.msra.mxu0 %v81
  %231 = vmatprep.subr.mxu0 0.0
  %232 = vmatpush1.msra.mxu0 %v80
  %233 = vmatprep.subr.mxu0 0.0
  %234 = vmatpush1.msra.mxu0 %v79
  %235 = vmatprep.subr.mxu0 0.0
  %236 = vmatpush1.msra.mxu0 %v78
  %237 = vmatprep.subr.mxu0 0.0
  %238 = vmatpush1.msra.mxu0 %v77
  %239 = vmatprep.subr.mxu0 0.0
  %240 = vmatpush1.msra.mxu0 %v76
  %241 = vmatprep.subr.mxu0 0.0
  %242 = vmatpush1.msra.mxu0 %v75
  %243 = vmatprep.subr.mxu0 0.0
  %244 = vmatpush1.msra.mxu0 %v74
  %245 = vmatprep.subr.mxu0 0.0
  %246 = vmatpush2.msra.mxu0 %v105
  %247 = vmatprep.subr.mxu0 0.0
  %248 = vmatpush2.msra.mxu0 %v104
  %249 = vmatprep.subr.mxu0 0.0
  %250 = vmatpush2.msra.mxu0 %v103
  %251 = vmatprep.subr.mxu0 0.0
  %252 = vmatpush2.msra.mxu0 %v102
  %253 = vmatprep.subr.mxu0 0.0
  %254 = vmatpush2.msra.mxu0 %v101
  %255 = vmatprep.subr.mxu0 0.0
  %256 = vmatpush2.msra.mxu0 %v100
  %257 = vmatprep.subr.mxu0 0.0
  %258 = vmatpush2.msra.mxu0 %v99
  %259 = vmatprep.subr.mxu0 0.0
  %260 = vmatpush2.msra.mxu0 %v98
  %261 = vmatprep.subr.mxu0 0.0
  %262 = vmatpush2.msra.mxu0 %v97
  %263 = vmatprep.subr.mxu0 0.0
  %264 = vmatpush2.msra.mxu0 %v96
  %265 = vmatprep.subr.mxu0 0.0
  %266 = vmatpush2.msra.mxu0 %v95
  %267 = vmatprep.subr.mxu0 0.0
  %268 = vmatpush2.msra.mxu0 %v94
  %269 = vmatprep.subr.mxu0 0.0
  %270 = vmatpush2.msra.mxu0 %v93
  %271 = vmatprep.subr.mxu0 0.0
  %272 = vmatpush2.msra.mxu0 %v92
  %273 = vmatprep.subr.mxu0 0.0
  %274 = vmatpush2.msra.mxu0 %v91
  %275 = vmatprep.subr.mxu0 0.0
  %276 = vmatpush2.msra.mxu0 %v90
  %277 = vmatprep.mubr.f32.mxu0 %v17
  %278 = vmatmul.mubr.f32.gmra.mxu0 %v16
  %v279 = vpop.f32.mrf.mxu0
  %v280 = vadd.f32 %v180, %v279
  %v281 = vpop.f32.mrf.mxu0
  %282 = vmatprep.mubr.f32.mxu0 %v21
  %283 = vmatmul.mubr.f32.gmra.mxu0 %v20
  %v284 = vpop.f32.mrf.mxu0
  %v285 = vadd.f32 %v185, %v284
  %v286 = vpop.f32.mrf.mxu0
  %287 = vmatprep.mubr.f32.mxu0 %v25
  %288 = vmatmul.mubr.f32.gmra.mxu0 %v24
  %v289 = vpop.f32.mrf.mxu0
  %v290 = vadd.f32 %v190, %v289
  %v291 = vpop.f32.mrf.mxu0
  %292 = vmatprep.mubr.f32.mxu0 %v29
  %293 = vmatmul.mubr.f32.gmra.mxu0 %v28
  %v294 = vpop.f32.mrf.mxu0
  %v295 = vadd.f32 %v195, %v294
  %v296 = vpop.f32.mrf.mxu0
  %297 = vmatprep.mubr.f32.mxu0 %v33
  %298 = vmatmul.mubr.f32.gmra.mxu0 %v32
  %v299 = vpop.f32.mrf.mxu0
  %v300 = vadd.f32 %v200, %v299
  %v301 = vpop.f32.mrf.mxu0
  %302 = vmatprep.mubr.f32.mxu0 %v37
  %303 = vmatmul.mubr.f32.gmra.mxu0 %v36
  %v304 = vpop.f32.mrf.mxu0
  %v305 = vadd.f32 %v205, %v304
  %v306 = vpop.f32.mrf.mxu0
  %307 = vmatprep.mubr.f32.mxu0 %v41
  %308 = vmatmul.mubr.f32.gmra.mxu0 %v40
  %v309 = vpop.f32.mrf.mxu0
  %v310 = vadd.f32 %v210, %v309
  %v311 = vpop.f32.mrf.mxu0
  %312 = vdwg.mxu0
  %v313 = vmax.f32 %v280, 0.0
  %v314 = vmax.f32 %v285, 0.0
  %v315 = vmax.f32 %v290, 0.0
  %v316 = vmax.f32 %v295, 0.0
  %v317 = vmax.f32 %v300, 0.0
  %v318 = vmax.f32 %v305, 0.0
  %v319 = vmax.f32 %v310, 0.0
  %vm320 = vcmask 523264
  %321 = vst.msk [vmem:[%s3] sm:$0xff] %vm320, %v313
  %322 = vst.msk [vmem:[%s3 + $0x8] sm:$0xff] %vm320, %v314
  %323 = vst.msk [vmem:[%s3 + $0x10] sm:$0xff] %vm320, %v315
  %324 = vst.msk [vmem:[%s3 + $0x18] sm:$0xff] %vm320, %v316
  %325 = vst.msk [vmem:[%s3 + $0x20] sm:$0xff] %vm320, %v317
  %326 = vst.msk [vmem:[%s3 + $0x28] sm:$0xff] %vm320, %v318
  %327 = vst.msk [vmem:[%s3 + $0x30] sm:$0xff] %vm320, %v319
  // Predicated region
  $region14: #{dqn_forward.5} parent=0 // pred_check
    _
  $region15: #{dqn_forward.5} parent=0 // pred_check_branch
    %329 = sbr.rel (0) target = $region17
  $region16: #{dqn_forward.5} parent=0 // pred_region
    _
  $region17: #{dqn_forward.5} parent=0 // pred_fallthru
    _
  // Predicated region
  $region18: #{dqn_forward.5} parent=0 // pred_check
    _
  $region19: #{dqn_forward.5} parent=0 // pred_check_branch
    %331 = sbr.rel (0) target = $region21
  $region20: #{dqn_forward.5} parent=0 // pred_region
    _
  $region21: #{dqn_forward.5} parent=0 // pred_fallthru
    _

// kernel: dqn_forward.6
$region0: #{dqn_forward.6}
  #allocation0 [shape = 'u32[]', space=smem, size = 0x4, offset = 0x4, fixed_abs, tag = 'smem constant byte address 0x4 - core index']
  #allocation1 [shape = 'u32[144,128]{1,0:T(1,128)}', space=vmem, size = 0x12000, scoped, tag = 'internal scratch']
  %s0 = inlined_call_operand.vmem [shape: f32[8,576], index: 0, kind: input, shape index: {}]
  %s1 = inlined_call_operand.vmem [shape: f32[576,64], index: 1, kind: input, shape index: {}]
  %s2 = inlined_call_operand.vmem [shape: f32[1,64], index: 2, kind: input, shape index: {}]
  %s3 = inlined_call_operand.vmem [shape: f32[8,64], index: 3, kind: output, shape index: {}]
  %s4 = sld [smem:[#allocation0]]
  $region22: #{dqn_forward.6} parent=0
    _
  %s6 = ssub.s32 1, %s4
  %s7 = scalar_select 0, %s6, %s4
  // Predicated region
  $region2: #{dqn_forward.6} parent=0 // pred_check
    _
  $region3: #{dqn_forward.6} parent=0 // pred_check_branch
    %9 = sbr.rel (0) target = $region5
  $region4: #{dqn_forward.6} parent=0 // pred_region
    _
  $region5: #{dqn_forward.6} parent=0 // pred_fallthru
    _
  // Predicated region
  $region6: #{dqn_forward.6} parent=0 // pred_check
    _
  $region7: #{dqn_forward.6} parent=0 // pred_check_branch
    %11 = sbr.rel (0) target = $region9
  $region8: #{dqn_forward.6} parent=0 // pred_region
    _
  $region9: #{dqn_forward.6} parent=0 // pred_fallthru
    _
  // Predicated region
  $region10: #{dqn_forward.6} parent=0 // pred_check
    _
  $region11: #{dqn_forward.6} parent=0 // pred_check_branch
    %13 = sbr.rel (0) target = $region13
  $region12: #{dqn_forward.6} parent=0 // pred_region
    _
  $region13: #{dqn_forward.6} parent=0 // pred_fallthru
    _
  %v14 = vld [vmem:[%s0] sm:$0xff]
  %v15 = vld [vmem:[%s0 + $0x8] sm:$0xff]
  %v16 = vld [vmem:[%s0 + $0x10] sm:$0xff]
  %v17 = vld [vmem:[%s0 + $0x18] sm:$0xff]
  %v18 = vld [vmem:[%s0 + $0x20] sm:$0xff]
  %v19 = vld [vmem:[%s1] sm:$0xff]
  %v20 = vld [vmem:[%s1 + $0x8] sm:$0xff]
  %v21 = vld [vmem:[%s1 + $0x10] sm:$0xff]
  %v22 = vld [vmem:[%s1 + $0x18] sm:$0xff]
  %v23 = vld [vmem:[%s1 + $0x20] sm:$0xff]
  %v24 = vld [vmem:[%s1 + $0x28] sm:$0xff]
  %v25 = vld [vmem:[%s1 + $0x30] sm:$0xff]
  %v26 = vld [vmem:[%s1 + $0x38] sm:$0xff]
  %v27 = vld [vmem:[%s1 + $0x40] sm:$0xff]
  %v28 = vld [vmem:[%s1 + $0x48] sm:$0xff]
  %v29 = vld [vmem:[%s1 + $0x50] sm:$0xff]
  %v30 = vld [vmem:[%s1 + $0x58] sm:$0xff]
  %v31 = vld [vmem:[%s1 + $0x60] sm:$0xff]
  %v32 = vld [vmem:[%s1 + $0x68] sm:$0xff]
  %v33 = vld [vmem:[%s1 + $0x70] sm:$0xff]
  %v34 = vld [vmem:[%s1 + $0x78] sm:$0xff]
  %v35 = vld [vmem:[%s1 + $0x80] sm:$0xff]
  %v36 = vld [vmem:[%s1 + $0x88] sm:$0xff]
  %v37 = vld [vmem:[%s1 + $0x90] sm:$0xff]
  %v38 = vld [vmem:[%s1 + $0x98] sm:$0xff]
  %v39 = vld [vmem:[%s1 + $0xa0] sm:$0xff]
  %v40 = vld [vmem:[%s1 + $0xa8] sm:$0xff]
  %v41 = vld [vmem:[%s1 + $0xb0] sm:$0xff]
  %v42 = vld [vmem:[%s1 + $0xb8] sm:$0xff]
  %v43 = vld [vmem:[%s1 + $0xc0] sm:$0xff]
  %v44 = vld [vmem:[%s1 + $0xc8] sm:$0xff]
  %v45 = vld [vmem:[%s1 + $0xd0] sm:$0xff]
  %v46 = vld [vmem:[%s1 + $0xd8] sm:$0xff]
  %v47 = vld [vmem:[%s1 + $0xe0] sm:$0xff]
  %v48 = vld [vmem:[%s1 + $0xe8] sm:$0xff]
  %v49 = vld [vmem:[%s1 + $0xf0] sm:$0xff]
  %v50 = vld [vmem:[%s1 + $0xf8] sm:$0xff]
  %v51 = vld [vmem:[%s1 + $0x100] sm:$0xff]
  %v52 = vld [vmem:[%s1 + $0x108] sm:$0xff]
  %v53 = vld [vmem:[%s1 + $0x110] sm:$0xff]
  %v54 = vld [vmem:[%s1 + $0x118] sm:$0xff]
  %v55 = vld [vmem:[%s1 + $0x120] sm:$0xff]
  %v56 = vld [vmem:[%s1 + $0x128] sm:$0xff]
  %v57 = vld [vmem:[%s1 + $0x130] sm:$0xff]
  %v58 = vld [vmem:[%s1 + $0x138] sm:$0xff]
  %v59 = vld [vmem:[%s1 + $0x140] sm:$0xff]
  %v60 = vld [vmem:[%s1 + $0x148] sm:$0xff]
  %v61 = vld [vmem:[%s1 + $0x150] sm:$0xff]
  %v62 = vld [vmem:[%s1 + $0x158] sm:$0xff]
  %v63 = vld [vmem:[%s1 + $0x160] sm:$0xff]
  %v64 = vld [vmem:[%s1 + $0x168] sm:$0xff]
  %v65 = vld [vmem:[%s1 + $0x170] sm:$0xff]
  %v66 = vld [vmem:[%s1 + $0x178] sm:$0xff]
  %v67 = vld [vmem:[%s1 + $0x180] sm:$0xff]
  %v68 = vld [vmem:[%s1 + $0x188] sm:$0xff]
  %v69 = vld [vmem:[%s1 + $0x190] sm:$0xff]
  %v70 = vld [vmem:[%s1 + $0x198] sm:$0xff]
  %v71 = vld [vmem:[%s1 + $0x1a0] sm:$0xff]
  %v72 = vld [vmem:[%s1 + $0x1a8] sm:$0xff]
  %v73 = vld [vmem:[%s1 + $0x1b0] sm:$0xff]
  %v74 = vld [vmem:[%s1 + $0x1b8] sm:$0xff]
  %v75 = vld [vmem:[%s1 + $0x1c0] sm:$0xff]
  %v76 = vld [vmem:[%s1 + $0x1c8] sm:$0xff]
  %v77 = vld [vmem:[%s1 + $0x1d0] sm:$0xff]
  %v78 = vld [vmem:[%s1 + $0x1d8] sm:$0xff]
  %v79 = vld [vmem:[%s1 + $0x1e0] sm:$0xff]
  %v80 = vld [vmem:[%s1 + $0x1e8] sm:$0xff]
  %v81 = vld [vmem:[%s1 + $0x1f0] sm:$0xff]
  %v82 = vld [vmem:[%s1 + $0x1f8] sm:$0xff]
  %v83 = vld [vmem:[%s1 + $0x200] sm:$0xff]
  %v84 = vld [vmem:[%s1 + $0x208] sm:$0xff]
  %v85 = vld [vmem:[%s1 + $0x210] sm:$0xff]
  %v86 = vld [vmem:[%s1 + $0x218] sm:$0xff]
  %v87 = vld [vmem:[%s1 + $0x220] sm:$0xff]
  %v88 = vld [vmem:[%s1 + $0x228] sm:$0xff]
  %v89 = vld [vmem:[%s1 + $0x230] sm:$0xff]
  %v90 = vld [vmem:[%s1 + $0x238] sm:$0xff]
  %v91 = vld [vmem:[%s2] sm:$0x1]
  %v93 = vlaneseq
  %v94 = vshrl.u32 %v93, 7
  %v95 = vsub.s32 0, %v94
  %v96 = vrot.slane %v91, %v95
  %vm98 = vcmask 523264
  %v100 = vsel %vm98, %v18, 0
  %102 = vmatprep.subr.mxu0 0.0
  %103 = vmatpush1.msra.mxu0 %v34
  %104 = vmatprep.subr.mxu0 0.0
  %105 = vmatpush1.msra.mxu0 %v33
  %106 = vmatprep.subr.mxu0 0.0
  %107 = vmatpush1.msra.mxu0 %v32
  %108 = vmatprep.subr.mxu0 0.0
  %109 = vmatpush1.msra.mxu0 %v31
  %110 = vmatprep.subr.mxu0 0.0
  %111 = vmatpush1.msra.mxu0 %v30
  %112 = vmatprep.subr.mxu0 0.0
  %113 = vmatpush1.msra.mxu0 %v29
  %114 = vmatprep.subr.mxu0 0.0
  %115 = vmatpush1.msra.mxu0 %v28
  %116 = vmatprep.subr.mxu0 0.0
  %117 = vmatpush1.msra.mxu0 %v27
  %118 = vmatprep.subr.mxu0 0.0
  %119 = vmatpush1.msra.mxu0 %v26
  %120 = vmatprep.subr.mxu0 0.0
  %121 = vmatpush1.msra.mxu0 %v25
  %122 = vmatprep.subr.mxu0 0.0
  %123 = vmatpush1.msra.mxu0 %v24
  %124 = vmatprep.subr.mxu0 0.0
  %125 = vmatpush1.msra.mxu0 %v23
  %126 = vmatprep.subr.mxu0 0.0
  %127 = vmatpush1.msra.mxu0 %v22
  %128 = vmatprep.subr.mxu0 0.0
  %129 = vmatpush1.msra.mxu0 %v21
  %130 = vmatprep.subr.mxu0 0.0
  %131 = vmatpush1.msra.mxu0 %v20
  %132 = vmatprep.subr.mxu0 0.0
  %133 = vmatpush1.msra.mxu0 %v19
  %134 = vmatprep.subr.mxu0 0.0
  %135 = vmatpush2.msra.mxu0 %v50
  %136 = vmatprep.subr.mxu0 0.0
  %137 = vmatpush2.msra.mxu0 %v49
  %138 = vmatprep.subr.mxu0 0.0
  %139 = vmatpush2.msra.mxu0 %v48
  %140 = vmatprep.subr.mxu0 0.0
  %141 = vmatpush2.msra.mxu0 %v47
  %142 = vmatprep.subr.mxu0 0.0
  %143 = vmatpush2.msra.mxu0 %v46
  %144 = vmatprep.subr.mxu0 0.0
  %145 = vmatpush2.msra.mxu0 %v45
  %146 = vmatprep.subr.mxu0 0.0
  %147 = vmatpush2.msra.mxu0 %v44
  %148 = vmatprep.subr.mxu0 0.0
  %149 = vmatpush2.msra.mxu0 %v43
  %150 = vmatprep.subr.mxu0 0.0
  %151 = vmatpush2.msra.mxu0 %v42
  %152 = vmatprep.subr.mxu0 0.0
  %153 = vmatpush2.msra.mxu0 %v41
  %154 = vmatprep.subr.mxu0 0.0
  %155 = vmatpush2.msra.mxu0 %v40
  %156 = vmatprep.subr.mxu0 0.0
  %157 = vmatpush2.msra.mxu0 %v39
  %158 = vmatprep.subr.mxu0 0.0
  %159 = vmatpush2.msra.mxu0 %v38
  %160 = vmatprep.subr.mxu0 0.0
  %161 = vmatpush2.msra.mxu0 %v37
  %162 = vmatprep.subr.mxu0 0.0
  %163 = vmatpush2.msra.mxu0 %v36
  %164 = vmatprep.subr.mxu0 0.0
  %165 = vmatpush2.msra.mxu0 %v35
  %166 = vmatprep.mubr.f32.mxu0 %v15
  %167 = vmatmul.mubr.f32.gmra.mxu0 %v14
  %v168 = vpop.f32.mrf.mxu0
  %v169 = vadd.f32 %v96, %v168
  %v170 = vpop.f32.mrf.mxu0
  %171 = vdwg.mxu0
  %172 = vmatprep.subr.mxu0 0.0
  %173 = vmatpush1.msra.mxu0 %v66
  %174 = vmatprep.subr.mxu0 0.0
  %175 = vmatpush1.msra.mxu0 %v65
  %176 = vmatprep.subr.mxu0 0.0
  %177 = vmatpush1.msra.mxu0 %v64
  %178 = vmatprep.subr.mxu0 0.0
  %179 = vmatpush1.msra.mxu0 %v63
  %180 = vmatprep.subr.mxu0 0.0
  %181 = vmatpush1.msra.mxu0 %v62
  %182 = vmatprep.subr.mxu0 0.0
  %183 = vmatpush1.msra.mxu0 %v61
  %184 = vmatprep.subr.mxu0 0.0
  %185 = vmatpush1.msra.mxu0 %v60
  %186 = vmatprep.subr.mxu0 0.0
  %187 = vmatpush1.msra.mxu0 %v59
  %188 = vmatprep.subr.mxu0 0.0
  %189 = vmatpush1.msra.mxu0 %v58
  %190 = vmatprep.subr.mxu0 0.0
  %191 = vmatpush1.msra.mxu0 %v57
  %192 = vmatprep.subr.mxu0 0.0
  %193 = vmatpush1.msra.mxu0 %v56
  %194 = vmatprep.subr.mxu0 0.0
  %195 = vmatpush1.msra.mxu0 %v55
  %196 = vmatprep.subr.mxu0 0.0
  %197 = vmatpush1.msra.mxu0 %v54
  %198 = vmatprep.subr.mxu0 0.0
  %199 = vmatpush1.msra.mxu0 %v53
  %200 = vmatprep.subr.mxu0 0.0
  %201 = vmatpush1.msra.mxu0 %v52
  %202 = vmatprep.subr.mxu0 0.0
  %203 = vmatpush1.msra.mxu0 %v51
  %204 = vmatprep.subr.mxu0 0.0
  %205 = vmatpush2.msra.mxu0 %v82
  %206 = vmatprep.subr.mxu0 0.0
  %207 = vmatpush2.msra.mxu0 %v81
  %208 = vmatprep.subr.mxu0 0.0
  %209 = vmatpush2.msra.mxu0 %v80
  %210 = vmatprep.subr.mxu0 0.0
  %211 = vmatpush2.msra.mxu0 %v79
  %212 = vmatprep.subr.mxu0 0.0
  %213 = vmatpush2.msra.mxu0 %v78
  %214 = vmatprep.subr.mxu0 0.0
  %215 = vmatpush2.msra.mxu0 %v77
  %216 = vmatprep.subr.mxu0 0.0
  %217 = vmatpush2.msra.mxu0 %v76
  %218 = vmatprep.subr.mxu0 0.0
  %219 = vmatpush2.msra.mxu0 %v75
  %220 = vmatprep.subr.mxu0 0.0
  %221 = vmatpush2.msra.mxu0 %v74
  %222 = vmatprep.subr.mxu0 0.0
  %223 = vmatpush2.msra.mxu0 %v73
  %224 = vmatprep.subr.mxu0 0.0
  %225 = vmatpush2.msra.mxu0 %v72
  %226 = vmatprep.subr.mxu0 0.0
  %227 = vmatpush2.msra.mxu0 %v71
  %228 = vmatprep.subr.mxu0 0.0
  %229 = vmatpush2.msra.mxu0 %v70
  %230 = vmatprep.subr.mxu0 0.0
  %231 = vmatpush2.msra.mxu0 %v69
  %232 = vmatprep.subr.mxu0 0.0
  %233 = vmatpush2.msra.mxu0 %v68
  %234 = vmatprep.subr.mxu0 0.0
  %235 = vmatpush2.msra.mxu0 %v67
  %236 = vmatprep.mubr.f32.mxu0 %v17
  %237 = vmatmul.mubr.f32.gmra.mxu0 %v16
  %v238 = vpop.f32.mrf.mxu0
  %v239 = vadd.f32 %v169, %v238
  %v240 = vpop.f32.mrf.mxu0
  %241 = vdwg.mxu0
  %242 = vmatprep.subr.mxu0 0.0
  %243 = vmatpush1.msra.mxu0 0.0
  %244 = vmatprep.subr.mxu0 0.0
  %245 = vmatpush1.msra.mxu0 0.0
  %246 = vmatprep.subr.mxu0 0.0
  %247 = vmatpush1.msra.mxu0 0.0
  %248 = vmatprep.subr.mxu0 0.0
  %249 = vmatpush1.msra.mxu0 0.0
  %250 = vmatprep.subr.mxu0 0.0
  %251 = vmatpush1.msra.mxu0 0.0
  %252 = vmatprep.subr.mxu0 0.0
  %253 = vmatpush1.msra.mxu0 0.0
  %254 = vmatprep.subr.mxu0 0.0
  %255 = vmatpush1.msra.mxu0 0.0
  %256 = vmatprep.subr.mxu0 0.0
  %257 = vmatpush1.msra.mxu0 0.0
  %258 = vmatprep.subr.mxu0 0.0
  %259 = vmatpush1.msra.mxu0 %v90
  %260 = vmatprep.subr.mxu0 0.0
  %261 = vmatpush1.msra.mxu0 %v89
  %262 = vmatprep.subr.mxu0 0.0
  %263 = vmatpush1.msra.mxu0 %v88
  %264 = vmatprep.subr.mxu0 0.0
  %265 = vmatpush1.msra.mxu0 %v87
  %266 = vmatprep.subr.mxu0 0.0
  %267 = vmatpush1.msra.mxu0 %v86
  %268 = vmatprep.subr.mxu0 0.0
  %269 = vmatpush1.msra.mxu0 %v85
  %270 = vmatprep.subr.mxu0 0.0
  %271 = vmatpush1.msra.mxu0 %v84
  %272 = vmatprep.subr.mxu0 0.0
  %273 = vmatpush1.msra.mxu0 %v83
  %274 = vmatprep.subr.mxu0 0.0
  %275 = vmatpush2.msra.mxu0 0.0
  %276 = vmatprep.subr.mxu0 0.0
  %277 = vmatpush2.msra.mxu0 0.0
  %278 = vmatprep.subr.mxu0 0.0
  %279 = vmatpush2.msra.mxu0 0.0
  %280 = vmatprep.subr.mxu0 0.0
  %281 = vmatpush2.msra.mxu0 0.0
  %282 = vmatprep.subr.mxu0 0.0
  %283 = vmatpush2.msra.mxu0 0.0
  %284 = vmatprep.subr.mxu0 0.0
  %285 = vmatpush2.msra.mxu0 0.0
  %286 = vmatprep.subr.mxu0 0.0
  %287 = vmatpush2.msra.mxu0 0.0
  %288 = vmatprep.subr.mxu0 0.0
  %289 = vmatpush2.msra.mxu0 0.0
  %290 = vmatprep.subr.mxu0 0.0
  %291 = vmatpush2.msra.mxu0 0.0
  %292 = vmatprep.subr.mxu0 0.0
  %293 = vmatpush2.msra.mxu0 0.0
  %294 = vmatprep.subr.mxu0 0.0
  %295 = vmatpush2.msra.mxu0 0.0
  %296 = vmatprep.subr.mxu0 0.0
  %297 = vmatpush2.msra.mxu0 0.0
  %298 = vmatprep.subr.mxu0 0.0
  %299 = vmatpush2.msra.mxu0 0.0
  %300 = vmatprep.subr.mxu0 0.0
  %301 = vmatpush2.msra.mxu0 0.0
  %302 = vmatprep.subr.mxu0 0.0
  %303 = vmatpush2.msra.mxu0 0.0
  %304 = vmatprep.subr.mxu0 0.0
  %305 = vmatpush2.msra.mxu0 0.0
  %306 = vmatprep.mubr.f32.mxu0 0.0
  %307 = vmatmul.mubr.f32.gmra.mxu0 %v100
  %v308 = vpop.f32.mrf.mxu0
  %v309 = vadd.f32 %v239, %v308
  %v310 = vpop.f32.mrf.mxu0
  %311 = vdwg.mxu0
  %v312 = vmax.f32 %v309, 0.0
  %313 = vst.msk [vmem:[%s3] sm:$0xff] %vm98, %v312
  // Predicated region
  $region14: #{dqn_forward.6} parent=0 // pred_check
    _
  $region15: #{dqn_forward.6} parent=0 // pred_check_branch
    %315 = sbr.rel (0) target = $region17
  $region16: #{dqn_forward.6} parent=0 // pred_region
    _
  $region17: #{dqn_forward.6} parent=0 // pred_fallthru
    _
  // Predicated region
  $region18: #{dqn_forward.6} parent=0 // pred_check
    _
  $region19: #{dqn_forward.6} parent=0 // pred_check_branch
    %317 = sbr.rel (0) target = $region21
  $region20: #{dqn_forward.6} parent=0 // pred_region
    _
  $region21: #{dqn_forward.6} parent=0 // pred_fallthru
    _

// kernel: dqn_forward.7
$region0: #{dqn_forward.7}
  #allocation0 [shape = 'u32[]', space=smem, size = 0x4, offset = 0x4, fixed_abs, tag = 'smem constant byte address 0x4 - core index']
  #allocation1 [shape = 'u32[144,128]{1,0:T(1,128)}', space=vmem, size = 0x12000, scoped, tag = 'internal scratch']
  %s0 = inlined_call_operand.vmem [shape: f32[8,256], index: 0, kind: input, shape index: {}]
  %s1 = inlined_call_operand.vmem [shape: f32[256,512], index: 1, kind: input, shape index: {}]
  %s2 = inlined_call_operand.vmem [shape: f32[1,512], index: 2, kind: input, shape index: {}]
  %s3 = inlined_call_operand.vmem [shape: f32[512,128], index: 3, kind: input, shape index: {}]
  %s4 = inlined_call_operand.vmem [shape: f32[1,128], index: 4, kind: input, shape index: {}]
  %s5 = inlined_call_operand.vmem [shape: f32[8,128], index: 5, kind: output, shape index: {}]
  %s6 = sld [smem:[#allocation0]]
  $region30: #{dqn_forward.7} parent=0
    _
  %s8 = ssub.s32 1, %s6
  %s9 = scalar_select 0, %s8, %s6
  // Predicated region
  $region2: #{dqn_forward.7} parent=0 // pred_check
    _
  $region3: #{dqn_forward.7} parent=0 // pred_check_branch
    %11 = sbr.rel (0) target = $region5
  $region4: #{dqn_forward.7} parent=0 // pred_region
    _
  $region5: #{dqn_forward.7} parent=0 // pred_fallthru
    _
  // Predicated region
  $region6: #{dqn_forward.7} parent=0 // pred_check
    _
  $region7: #{dqn_forward.7} parent=0 // pred_check_branch
    %13 = sbr.rel (0) target = $region9
  $region8: #{dqn_forward.7} parent=0 // pred_region
    _
  $region9: #{dqn_forward.7} parent=0 // pred_fallthru
    _
  // Predicated region
  $region10: #{dqn_forward.7} parent=0 // pred_check
    _
  $region11: #{dqn_forward.7} parent=0 // pred_check_branch
    %15 = sbr.rel (0) target = $region13
  $region12: #{dqn_forward.7} parent=0 // pred_region
    _
  $region13: #{dqn_forward.7} parent=0 // pred_fallthru
    _
  // Predicated region
  $region14: #{dqn_forward.7} parent=0 // pred_check
    _
  $region15: #{dqn_forward.7} parent=0 // pred_check_branch
    %17 = sbr.rel (0) target = $region17
  $region16: #{dqn_forward.7} parent=0 // pred_region
    _
  $region17: #{dqn_forward.7} parent=0 // pred_fallthru
    _
  // Predicated region
  $region18: #{dqn_forward.7} parent=0 // pred_check
    _
  $region19: #{dqn_forward.7} parent=0 // pred_check_branch
    %19 = sbr.rel (0) target = $region21
  $region20: #{dqn_forward.7} parent=0 // pred_region
    _
  $region21: #{dqn_forward.7} parent=0 // pred_fallthru
    _
  %v20 = vld [vmem:[%s0] sm:$0xff]
  %v21 = vld [vmem:[%s0 + $0x8] sm:$0xff]
  %v22 = vld [vmem:[%s1] sm:$0xff]
  %v23 = vld [vmem:[%s1 + $0x8] sm:$0xff]
  %v24 = vld [vmem:[%s1 + $0x10] sm:$0xff]
  %v25 = vld [vmem:[%s1 + $0x18] sm:$0xff]
  %v26 = vld [vmem:[%s1 + $0x20] sm:$0xff]
  %v27 = vld [vmem:[%s1 + $0x28] sm:$0xff]
  %v28 = vld [vmem:[%s1 + $0x30] sm:$0xff]
  %v29 = vld [vmem:[%s1 + $0x38] sm:$0xff]
  %v30 = vld [vmem:[%s1 + $0x40] sm:$0xff]
  %v31 = vld [vmem:[%s1 + $0x48] sm:$0xff]
  %v32 = vld [vmem:[%s1 + $0x50] sm:$0xff]
  %v33 = vld [vmem:[%s1 + $0x58] sm:$0xff]
  %v34 = vld [vmem:[%s1 + $0x60] sm:$0xff]
  %v35 = vld [vmem:[%s1 + $0x68] sm:$0xff]
  %v36 = vld [vmem:[%s1 + $0x70] sm:$0xff]
  %v37 = vld [vmem:[%s1 + $0x78] sm:$0xff]
  %v38 = vld [vmem:[%s1 + $0x80] sm:$0xff]
  %v39 = vld [vmem:[%s1 + $0x88] sm:$0xff]
  %v40 = vld [vmem:[%s1 + $0x90] sm:$0xff]
  %v41 = vld [vmem:[%s1 + $0x98] sm:$0xff]
  %v42 = vld [vmem:[%s1 + $0xa0] sm:$0xff]
  %v43 = vld [vmem:[%s1 + $0xa8] sm:$0xff]
  %v44 = vld [vmem:[%s1 + $0xb0] sm:$0xff]
  %v45 = vld [vmem:[%s1 + $0xb8] sm:$0xff]
  %v46 = vld [vmem:[%s1 + $0xc0] sm:$0xff]
  %v47 = vld [vmem:[%s1 + $0xc8] sm:$0xff]
  %v48 = vld [vmem:[%s1 + $0xd0] sm:$0xff]
  %v49 = vld [vmem:[%s1 + $0xd8] sm:$0xff]
  %v50 = vld [vmem:[%s1 + $0xe0] sm:$0xff]
  %v51 = vld [vmem:[%s1 + $0xe8] sm:$0xff]
  %v52 = vld [vmem:[%s1 + $0xf0] sm:$0xff]
  %v53 = vld [vmem:[%s1 + $0xf8] sm:$0xff]
  %v54 = vld [vmem:[%s1 + $0x100] sm:$0xff]
  %v55 = vld [vmem:[%s1 + $0x108] sm:$0xff]
  %v56 = vld [vmem:[%s1 + $0x110] sm:$0xff]
  %v57 = vld [vmem:[%s1 + $0x118] sm:$0xff]
  %v58 = vld [vmem:[%s1 + $0x120] sm:$0xff]
  %v59 = vld [vmem:[%s1 + $0x128] sm:$0xff]
  %v60 = vld [vmem:[%s1 + $0x130] sm:$0xff]
  %v61 = vld [vmem:[%s1 + $0x138] sm:$0xff]
  %v62 = vld [vmem:[%s1 + $0x140] sm:$0xff]
  %v63 = vld [vmem:[%s1 + $0x148] sm:$0xff]
  %v64 = vld [vmem:[%s1 + $0x150] sm:$0xff]
  %v65 = vld [vmem:[%s1 + $0x158] sm:$0xff]
  %v66 = vld [vmem:[%s1 + $0x160] sm:$0xff]
  %v67 = vld [vmem:[%s1 + $0x168] sm:$0xff]
  %v68 = vld [vmem:[%s1 + $0x170] sm:$0xff]
  %v69 = vld [vmem:[%s1 + $0x178] sm:$0xff]
  %v70 = vld [vmem:[%s1 + $0x180] sm:$0xff]
  %v71 = vld [vmem:[%s1 + $0x188] sm:$0xff]
  %v72 = vld [vmem:[%s1 + $0x190] sm:$0xff]
  %v73 = vld [vmem:[%s1 + $0x198] sm:$0xff]
  %v74 = vld [vmem:[%s1 + $0x1a0] sm:$0xff]
  %v75 = vld [vmem:[%s1 + $0x1a8] sm:$0xff]
  %v76 = vld [vmem:[%s1 + $0x1b0] sm:$0xff]
  %v77 = vld [vmem:[%s1 + $0x1b8] sm:$0xff]
  %v78 = vld [vmem:[%s1 + $0x1c0] sm:$0xff]
  %v79 = vld [vmem:[%s1 + $0x1c8] sm:$0xff]
  %v80 = vld [vmem:[%s1 + $0x1d0] sm:$0xff]
  %v81 = vld [vmem:[%s1 + $0x1d8] sm:$0xff]
  %v82 = vld [vmem:[%s1 + $0x1e0] sm:$0xff]
  %v83 = vld [vmem:[%s1 + $0x1e8] sm:$0xff]
  %v84 = vld [vmem:[%s1 + $0x1f0] sm:$0xff]
  %v85 = vld [vmem:[%s1 + $0x1f8] sm:$0xff]
  %v86 = vld [vmem:[%s1 + $0x200] sm:$0xff]
  %v87 = vld [vmem:[%s1 + $0x208] sm:$0xff]
  %v88 = vld [vmem:[%s1 + $0x210] sm:$0xff]
  %v89 = vld [vmem:[%s1 + $0x218] sm:$0xff]
  %v90 = vld [vmem:[%s1 + $0x220] sm:$0xff]
  %v91 = vld [vmem:[%s1 + $0x228] sm:$0xff]
  %v92 = vld [vmem:[%s1 + $0x230] sm:$0xff]
  %v93 = vld [vmem:[%s1 + $0x238] sm:$0xff]
  %v94 = vld [vmem:[%s1 + $0x240] sm:$0xff]
  %v95 = vld [vmem:[%s1 + $0x248] sm:$0xff]
  %v96 = vld [vmem:[%s1 + $0x250] sm:$0xff]
  %v97 = vld [vmem:[%s1 + $0x258] sm:$0xff]
  %v98 = vld [vmem:[%s1 + $0x260] sm:$0xff]
  %v99 = vld [vmem:[%s1 + $0x268] sm:$0xff]
  %v100 = vld [vmem:[%s1 + $0x270] sm:$0xff]
  %v101 = vld [vmem:[%s1 + $0x278] sm:$0xff]
  %v102 = vld [vmem:[%s1 + $0x280] sm:$0xff]
  %v103 = vld [vmem:[%s1 + $0x288] sm:$0xff]
  %v104 = vld [vmem:[%s1 + $0x290] sm:$0xff]
  %v105 = vld [vmem:[%s1 + $0x298] sm:$0xff]
  %v106 = vld [vmem:[%s1 + $0x2a0] sm:$0xff]
  %v107 = vld [vmem:[%s1 + $0x2a8] sm:$0xff]
  %v108 = vld [vmem:[%s1 + $0x2b0] sm:$0xff]
  %v109 = vld [vmem:[%s1 + $0x2b8] sm:$0xff]
  %v110 = vld [vmem:[%s1 + $0x2c0] sm:$0xff]
  %v111 = vld [vmem:[%s1 + $0x2c8] sm:$0xff]
  %v112 = vld [vmem:[%s1 + $0x2d0] sm:$0xff]
  %v113 = vld [vmem:[%s1 + $0x2d8] sm:$0xff]
  %v114 = vld [vmem:[%s1 + $0x2e0] sm:$0xff]
  %v115 = vld [vmem:[%s1 + $0x2e8] sm:$0xff]
  %v116 = vld [vmem:[%s1 + $0x2f0] sm:$0xff]
  %v117 = vld [vmem:[%s1 + $0x2f8] sm:$0xff]
  %v118 = vld [vmem:[%s1 + $0x300] sm:$0xff]
  %v119 = vld [vmem:[%s1 + $0x308] sm:$0xff]
  %v120 = vld [vmem:[%s1 + $0x310] sm:$0xff]
  %v121 = vld [vmem:[%s1 + $0x318] sm:$0xff]
  %v122 = vld [vmem:[%s1 + $0x320] sm:$0xff]
  %v123 = vld [vmem:[%s1 + $0x328] sm:$0xff]
  %v124 = vld [vmem:[%s1 + $0x330] sm:$0xff]
  %v125 = vld [vmem:[%s1 + $0x338] sm:$0xff]
  %v126 = vld [vmem:[%s1 + $0x340] sm:$0xff]
  %v127 = vld [vmem:[%s1 + $0x348] sm:$0xff]
  %v128 = vld [vmem:[%s1 + $0x350] sm:$0xff]
  %v129 = vld [vmem:[%s1 + $0x358] sm:$0xff]
  %v130 = vld [vmem:[%s1 + $0x360] sm:$0xff]
  %v131 = vld [vmem:[%s1 + $0x368] sm:$0xff]
  %v132 = vld [vmem:[%s1 + $0x370] sm:$0xff]
  %v133 = vld [vmem:[%s1 + $0x378] sm:$0xff]
  %v134 = vld [vmem:[%s1 + $0x380] sm:$0xff]
  %v135 = vld [vmem:[%s1 + $0x388] sm:$0xff]
  %v136 = vld [vmem:[%s1 + $0x390] sm:$0xff]
  %v137 = vld [vmem:[%s1 + $0x398] sm:$0xff]
  %v138 = vld [vmem:[%s1 + $0x3a0] sm:$0xff]
  %v139 = vld [vmem:[%s1 + $0x3a8] sm:$0xff]
  %v140 = vld [vmem:[%s1 + $0x3b0] sm:$0xff]
  %v141 = vld [vmem:[%s1 + $0x3b8] sm:$0xff]
  %v142 = vld [vmem:[%s1 + $0x3c0] sm:$0xff]
  %v143 = vld [vmem:[%s1 + $0x3c8] sm:$0xff]
  %v144 = vld [vmem:[%s1 + $0x3d0] sm:$0xff]
  %v145 = vld [vmem:[%s1 + $0x3d8] sm:$0xff]
  %v146 = vld [vmem:[%s1 + $0x3e0] sm:$0xff]
  %v147 = vld [vmem:[%s1 + $0x3e8] sm:$0xff]
  %v148 = vld [vmem:[%s1 + $0x3f0] sm:$0xff]
  %v149 = vld [vmem:[%s1 + $0x3f8] sm:$0xff]
  %v150 = vld [vmem:[%s2] sm:$0xf]
  %v152 = vlaneseq
  %v153 = vshrl.u32 %v152, 7
  %v154 = vsub.s32 0, %v153
  %v155 = vrot.slane %v150, %v154
  %v156 = vlaneseq
  %v157 = vshrl.u32 %v156, 7
  %v158 = vsub.s32 1, %v157
  %v159 = vrot.slane %v150, %v158
  %v160 = vlaneseq
  %v161 = vshrl.u32 %v160, 7
  %v162 = vsub.s32 2, %v161
  %v163 = vrot.slane %v150, %v162
  %v164 = vlaneseq
  %v165 = vshrl.u32 %v164, 7
  %v166 = vsub.s32 3, %v165
  %v167 = vrot.slane %v150, %v166
  %172 = vmatprep.subr.mxu0 %v83
  %173 = vmatpush1.msra.mxu0 %v82
  %174 = vmatprep.subr.mxu0 %v79
  %175 = vmatpush1.msra.mxu0 %v78
  %176 = vmatprep.subr.mxu0 %v75
  %177 = vmatpush1.msra.mxu0 %v74
  %178 = vmatprep.subr.mxu0 %v71
  %179 = vmatpush1.msra.mxu0 %v70
  %180 = vmatprep.subr.mxu0 %v67
  %181 = vmatpush1.msra.mxu0 %v66
  %182 = vmatprep.subr.mxu0 %v63
  %183 = vmatpush1.msra.mxu0 %v62
  %184 = vmatprep.subr.mxu0 %v59
  %185 = vmatpush1.msra.mxu0 %v58
  %186 = vmatprep.subr.mxu0 %v55
  %187 = vmatpush1.msra.mxu0 %v54
  %188 = vmatprep.subr.mxu0 %v51
  %189 = vmatpush1.msra.mxu0 %v50
  %190 = vmatprep.subr.mxu0 %v47
  %191 = vmatpush1.msra.mxu0 %v46
  %192 = vmatprep.subr.mxu0 %v43
  %193 = vmatpush1.msra.mxu0 %v42
  %194 = vmatprep.subr.mxu0 %v39
  %195 = vmatpush1.msra.mxu0 %v38
  %196 = vmatprep.subr.mxu0 %v35
  %197 = vmatpush1.msra.mxu0 %v34
  %198 = vmatprep.subr.mxu0 %v31
  %199 = vmatpush1.msra.mxu0 %v30
  %200 = vmatprep.subr.mxu0 %v27
  %201 = vmatpush1.msra.mxu0 %v26
  %202 = vmatprep.subr.mxu0 %v23
  %203 = vmatpush1.msra.mxu0 %v22
  %204 = vmatprep.subr.mxu0 %v147
  %205 = vmatpush2.msra.mxu0 %v146
  %206 = vmatprep.subr.mxu0 %v143
  %207 = vmatpush2.msra.mxu0 %v142
  %208 = vmatprep.subr.mxu0 %v139
  %209 = vmatpush2.msra.mxu0 %v138
  %210 = vmatprep.subr.mxu0 %v135
  %211 = vmatpush2.msra.mxu0 %v134
  %212 = vmatprep.subr.mxu0 %v131
  %213 = vmatpush2.msra.mxu0 %v130
  %214 = vmatprep.subr.mxu0 %v127
  %215 = vmatpush2.msra.mxu0 %v126
  %216 = vmatprep.subr.mxu0 %v123
  %217 = vmatpush2.msra.mxu0 %v122
  %218 = vmatprep.subr.mxu0 %v119
  %219 = vmatpush2.msra.mxu0 %v118
  %220 = vmatprep.subr.mxu0 %v115
  %221 = vmatpush2.msra.mxu0 %v114
  %222 = vmatprep.subr.mxu0 %v111
  %223 = vmatpush2.msra.mxu0 %v110
  %224 = vmatprep.subr.mxu0 %v107
  %225 = vmatpush2.msra.mxu0 %v106
  %226 = vmatprep.subr.mxu0 %v103
  %227 = vmatpush2.msra.mxu0 %v102
  %228 = vmatprep.subr.mxu0 %v99
  %229 = vmatpush2.msra.mxu0 %v98
  %230 = vmatprep.subr.mxu0 %v95
  %231 = vmatpush2.msra.mxu0 %v94
  %232 = vmatprep.subr.mxu0 %v91
  %233 = vmatpush2.msra.mxu0 %v90
  %234 = vmatprep.subr.mxu0 %v87
  %235 = vmatpush2.msra.mxu0 %v86
  %236 = vmatprep.mubr.f32.mxu0 %v21
  %237 = vmatmul.mubr.f32.gmra.mxu0 %v20
  %v238 = vpop.f32.mrf.mxu0
  %v239 = vadd.f32 %v155, %v238
  %v240 = vpop.f32.mrf.mxu0
  %v241 = vadd.f32 %v159, %v240
  %242 = vdwg.mxu0
  %243 = vmatprep.subr.mxu0 %v85
  %244 = vmatpush1.msra.mxu0 %v84
  %245 = vmatprep.subr.mxu0 %v81
  %246 = vmatpush1.msra.mxu0 %v80
  %247 = vmatprep.subr.mxu0 %v77
  %248 = vmatpush1.msra.mxu0 %v76
  %249 = vmatprep.subr.mxu0 %v73
  %250 = vmatpush1.msra.mxu0 %v72
  %251 = vmatprep.subr.mxu0 %v69
  %252 = vmatpush1.msra.mxu0 %v68
  %253 = vmatprep.subr.mxu0 %v65
  %254 = vmatpush1.msra.mxu0 %v64
  %255 = vmatprep.subr.mxu0 %v61
  %256 = vmatpush1.msra.mxu0 %v60
  %257 = vmatprep.subr.mxu0 %v57
  %258 = vmatpush1.msra.mxu0 %v56
  %259 = vmatprep.subr.mxu0 %v53
  %260 = vmatpush1.msra.mxu0 %v52
  %261 = vmatprep.subr.mxu0 %v49
  %262 = vmatpush1.msra.mxu0 %v48
  %263 = vmatprep.subr.mxu0 %v45
  %264 = vmatpush1.msra.mxu0 %v44
  %265 = vmatprep.subr.mxu0 %v41
  %266 = vmatpush1.msra.mxu0 %v40
  %267 = vmatprep.subr.mxu0 %v37
  %268 = vmatpush1.msra.mxu0 %v36
  %269 = vmatprep.subr.mxu0 %v33
  %270 = vmatpush1.msra.mxu0 %v32
  %271 = vmatprep.subr.mxu0 %v29
  %272 = vmatpush1.msra.mxu0 %v28
  %273 = vmatprep.subr.mxu0 %v25
  %274 = vmatpush1.msra.mxu0 %v24
  %275 = vmatprep.subr.mxu0 %v149
  %276 = vmatpush2.msra.mxu0 %v148
  %277 = vmatprep.subr.mxu0 %v145
  %278 = vmatpush2.msra.mxu0 %v144
  %279 = vmatprep.subr.mxu0 %v141
  %280 = vmatpush2.msra.mxu0 %v140
  %281 = vmatprep.subr.mxu0 %v137
  %282 = vmatpush2.msra.mxu0 %v136
  %283 = vmatprep.subr.mxu0 %v133
  %284 = vmatpush2.msra.mxu0 %v132
  %285 = vmatprep.subr.mxu0 %v129
  %286 = vmatpush2.msra.mxu0 %v128
  %287 = vmatprep.subr.mxu0 %v125
  %288 = vmatpush2.msra.mxu0 %v124
  %289 = vmatprep.subr.mxu0 %v121
  %290 = vmatpush2.msra.mxu0 %v120
  %291 = vmatprep.subr.mxu0 %v117
  %292 = vmatpush2.msra.mxu0 %v116
  %293 = vmatprep.subr.mxu0 %v113
  %294 = vmatpush2.msra.mxu0 %v112
  %295 = vmatprep.subr.mxu0 %v109
  %296 = vmatpush2.msra.mxu0 %v108
  %297 = vmatprep.subr.mxu0 %v105
  %298 = vmatpush2.msra.mxu0 %v104
  %299 = vmatprep.subr.mxu0 %v101
  %300 = vmatpush2.msra.mxu0 %v100
  %301 = vmatprep.subr.mxu0 %v97
  %302 = vmatpush2.msra.mxu0 %v96
  %303 = vmatprep.subr.mxu0 %v93
  %304 = vmatpush2.msra.mxu0 %v92
  %305 = vmatprep.subr.mxu0 %v89
  %306 = vmatpush2.msra.mxu0 %v88
  %307 = vmatprep.mubr.f32.mxu0 %v21
  %308 = vmatmul.mubr.f32.gmra.mxu0 %v20
  %v309 = vpop.f32.mrf.mxu0
  %v310 = vadd.f32 %v163, %v309
  %v311 = vpop.f32.mrf.mxu0
  %v312 = vadd.f32 %v167, %v311
  %313 = vdwg.mxu0
  %v314 = vmax.f32 %v239, 0.0
  %v315 = vmax.f32 %v241, 0.0
  %v316 = vmax.f32 %v310, 0.0
  %v317 = vmax.f32 %v312, 0.0
  %v318 = vld [vmem:[%s3] sm:$0xff]
  %v319 = vld [vmem:[%s3 + $0x8] sm:$0xff]
  %v320 = vld [vmem:[%s3 + $0x10] sm:$0xff]
  %v321 = vld [vmem:[%s3 + $0x18] sm:$0xff]
  %v322 = vld [vmem:[%s3 + $0x20] sm:$0xff]
  %v323 = vld [vmem:[%s3 + $0x28] sm:$0xff]
  %v324 = vld [vmem:[%s3 + $0x30] sm:$0xff]
  %v325 = vld [vmem:[%s3 + $0x38] sm:$0xff]
  %v326 = vld [vmem:[%s3 + $0x40] sm:$0xff]
  %v327 = vld [vmem:[%s3 + $0x48] sm:$0xff]
  %v328 = vld [vmem:[%s3 + $0x50] sm:$0xff]
  %v329 = vld [vmem:[%s3 + $0x58] sm:$0xff]
  %v330 = vld [vmem:[%s3 + $0x60] sm:$0xff]
  %v331 = vld [vmem:[%s3 + $0x68] sm:$0xff]
  %v332 = vld [vmem:[%s3 + $0x70] sm:$0xff]
  %v333 = vld [vmem:[%s3 + $0x78] sm:$0xff]
  %v334 = vld [vmem:[%s3 + $0x80] sm:$0xff]
  %v335 = vld [vmem:[%s3 + $0x88] sm:$0xff]
  %v336 = vld [vmem:[%s3 + $0x90] sm:$0xff]
  %v337 = vld [vmem:[%s3 + $0x98] sm:$0xff]
  %v338 = vld [vmem:[%s3 + $0xa0] sm:$0xff]
  %v339 = vld [vmem:[%s3 + $0xa8] sm:$0xff]
  %v340 = vld [vmem:[%s3 + $0xb0] sm:$0xff]
  %v341 = vld [vmem:[%s3 + $0xb8] sm:$0xff]
  %v342 = vld [vmem:[%s3 + $0xc0] sm:$0xff]
  %v343 = vld [vmem:[%s3 + $0xc8] sm:$0xff]
  %v344 = vld [vmem:[%s3 + $0xd0] sm:$0xff]
  %v345 = vld [vmem:[%s3 + $0xd8] sm:$0xff]
  %v346 = vld [vmem:[%s3 + $0xe0] sm:$0xff]
  %v347 = vld [vmem:[%s3 + $0xe8] sm:$0xff]
  %v348 = vld [vmem:[%s3 + $0xf0] sm:$0xff]
  %v349 = vld [vmem:[%s3 + $0xf8] sm:$0xff]
  %v350 = vld [vmem:[%s3 + $0x100] sm:$0xff]
  %v351 = vld [vmem:[%s3 + $0x108] sm:$0xff]
  %v352 = vld [vmem:[%s3 + $0x110] sm:$0xff]
  %v353 = vld [vmem:[%s3 + $0x118] sm:$0xff]
  %v354 = vld [vmem:[%s3 + $0x120] sm:$0xff]
  %v355 = vld [vmem:[%s3 + $0x128] sm:$0xff]
  %v356 = vld [vmem:[%s3 + $0x130] sm:$0xff]
  %v357 = vld [vmem:[%s3 + $0x138] sm:$0xff]
  %v358 = vld [vmem:[%s3 + $0x140] sm:$0xff]
  %v359 = vld [vmem:[%s3 + $0x148] sm:$0xff]
  %v360 = vld [vmem:[%s3 + $0x150] sm:$0xff]
  %v361 = vld [vmem:[%s3 + $0x158] sm:$0xff]
  %v362 = vld [vmem:[%s3 + $0x160] sm:$0xff]
  %v363 = vld [vmem:[%s3 + $0x168] sm:$0xff]
  %v364 = vld [vmem:[%s3 + $0x170] sm:$0xff]
  %v365 = vld [vmem:[%s3 + $0x178] sm:$0xff]
  %v366 = vld [vmem:[%s3 + $0x180] sm:$0xff]
  %v367 = vld [vmem:[%s3 + $0x188] sm:$0xff]
  %v368 = vld [vmem:[%s3 + $0x190] sm:$0xff]
  %v369 = vld [vmem:[%s3 + $0x198] sm:$0xff]
  %v370 = vld [vmem:[%s3 + $0x1a0] sm:$0xff]
  %v371 = vld [vmem:[%s3 + $0x1a8] sm:$0xff]
  %v372 = vld [vmem:[%s3 + $0x1b0] sm:$0xff]
  %v373 = vld [vmem:[%s3 + $0x1b8] sm:$0xff]
  %v374 = vld [vmem:[%s3 + $0x1c0] sm:$0xff]
  %v375 = vld [vmem:[%s3 + $0x1c8] sm:$0xff]
  %v376 = vld [vmem:[%s3 + $0x1d0] sm:$0xff]
  %v377 = vld [vmem:[%s3 + $0x1d8] sm:$0xff]
  %v378 = vld [vmem:[%s3 + $0x1e0] sm:$0xff]
  %v379 = vld [vmem:[%s3 + $0x1e8] sm:$0xff]
  %v380 = vld [vmem:[%s3 + $0x1f0] sm:$0xff]
  %v381 = vld [vmem:[%s3 + $0x1f8] sm:$0xff]
  %v382 = vld [vmem:[%s4] sm:$0x1]
  %v384 = vlaneseq
  %v385 = vshrl.u32 %v384, 7
  %v386 = vsub.s32 0, %v385
  %v387 = vrot.slane %v382, %v386
  %389 = vmatprep.subr.mxu0 0.0
  %390 = vmatpush1.msra.mxu0 %v333
  %391 = vmatprep.subr.mxu0 0.0
  %392 = vmatpush1.msra.mxu0 %v332
  %393 = vmatprep.subr.mxu0 0.0
  %394 = vmatpush1.msra.mxu0 %v331
  %395 = vmatprep.subr.mxu0 0.0
  %396 = vmatpush1.msra.mxu0 %v330
  %397 = vmatprep.subr.mxu0 0.0
  %398 = vmatpush1.msra.mxu0 %v329
  %399 = vmatprep.subr.mxu0 0.0
  %400 = vmatpush1.msra.mxu0 %v328
  %401 = vmatprep.subr.mxu0 0.0
  %402 = vmatpush1.msra.mxu0 %v327
  %403 = vmatprep.subr.mxu0 0.0
  %404 = vmatpush1.msra.mxu0 %v326
  %405 = vmatprep.subr.mxu0 0.0
  %406 = vmatpush1.msra.mxu0 %v325
  %407 = vmatprep.subr.mxu0 0.0
  %408 = vmatpush1.msra.mxu0 %v324
  %409 = vmatprep.subr.mxu0 0.0
  %410 = vmatpush1.msra.mxu0 %v323
  %411 = vmatprep.subr.mxu0 0.0
  %412 = vmatpush1.msra.mxu0 %v322
  %413 = vmatprep.subr.mxu0 0.0
  %414 = vmatpush1.msra.mxu0 %v321
  %415 = vmatprep.subr.mxu0 0.0
  %416 = vmatpush1.msra.mxu0 %v320
  %417 = vmatprep.subr.mxu0 0.0
  %418 = vmatpush1.msra.mxu0 %v319
  %419 = vmatprep.subr.mxu0 0.0
  %420 = vmatpush1.msra.mxu0 %v318
  %421 = vmatprep.subr.mxu0 0.0
  %422 = vmatpush2.msra.mxu0 %v349
  %423 = vmatprep.subr.mxu0 0.0
  %424 = vmatpush2.msra.mxu0 %v348
  %425 = vmatprep.subr.mxu0 0.0
  %426 = vmatpush2.msra.mxu0 %v347
  %427 = vmatprep.subr.mxu0 0.0
  %428 = vmatpush2.msra.mxu0 %v346
  %429 = vmatprep.subr.mxu0 0.0
  %430 = vmatpush2.msra.mxu0 %v345
  %431 = vmatprep.subr.mxu0 0.0
  %432 = vmatpush2.msra.mxu0 %v344
  %433 = vmatprep.subr.mxu0 0.0
  %434 = vmatpush2.msra.mxu0 %v343
  %435 = vmatprep.subr.mxu0 0.0
  %436 = vmatpush2.msra.mxu0 %v342
  %437 = vmatprep.subr.mxu0 0.0
  %438 = vmatpush2.msra.mxu0 %v341
  %439 = vmatprep.subr.mxu0 0.0
  %440 = vmatpush2.msra.mxu0 %v340
  %441 = vmatprep.subr.mxu0 0.0
  %442 = vmatpush2.msra.mxu0 %v339
  %443 = vmatprep.subr.mxu0 0.0
  %444 = vmatpush2.msra.mxu0 %v338
  %445 = vmatprep.subr.mxu0 0.0
  %446 = vmatpush2.msra.mxu0 %v337
  %447 = vmatprep.subr.mxu0 0.0
  %448 = vmatpush2.msra.mxu0 %v336
  %449 = vmatprep.subr.mxu0 0.0
  %450 = vmatpush2.msra.mxu0 %v335
  %451 = vmatprep.subr.mxu0 0.0
  %452 = vmatpush2.msra.mxu0 %v334
  %453 = vmatprep.mubr.f32.mxu0 %v315
  %454 = vmatmul.mubr.f32.gmra.mxu0 %v314
  %v455 = vpop.f32.mrf.mxu0
  %v456 = vadd.f32 %v387, %v455
  %v457 = vpop.f32.mrf.mxu0
  %458 = vdwg.mxu0
  %459 = vmatprep.subr.mxu0 0.0
  %460 = vmatpush1.msra.mxu0 %v365
  %461 = vmatprep.subr.mxu0 0.0
  %462 = vmatpush1.msra.mxu0 %v364
  %463 = vmatprep.subr.mxu0 0.0
  %464 = vmatpush1.msra.mxu0 %v363
  %465 = vmatprep.subr.mxu0 0.0
  %466 = vmatpush1.msra.mxu0 %v362
  %467 = vmatprep.subr.mxu0 0.0
  %468 = vmatpush1.msra.mxu0 %v361
  %469 = vmatprep.subr.mxu0 0.0
  %470 = vmatpush1.msra.mxu0 %v360
  %471 = vmatprep.subr.mxu0 0.0
  %472 = vmatpush1.msra.mxu0 %v359
  %473 = vmatprep.subr.mxu0 0.0
  %474 = vmatpush1.msra.mxu0 %v358
  %475 = vmatprep.subr.mxu0 0.0
  %476 = vmatpush1.msra.mxu0 %v357
  %477 = vmatprep.subr.mxu0 0.0
  %478 = vmatpush1.msra.mxu0 %v356
  %479 = vmatprep.subr.mxu0 0.0
  %480 = vmatpush1.msra.mxu0 %v355
  %481 = vmatprep.subr.mxu0 0.0
  %482 = vmatpush1.msra.mxu0 %v354
  %483 = vmatprep.subr.mxu0 0.0
  %484 = vmatpush1.msra.mxu0 %v353
  %485 = vmatprep.subr.mxu0 0.0
  %486 = vmatpush1.msra.mxu0 %v352
  %487 = vmatprep.subr.mxu0 0.0
  %488 = vmatpush1.msra.mxu0 %v351
  %489 = vmatprep.subr.mxu0 0.0
  %490 = vmatpush1.msra.mxu0 %v350
  %491 = vmatprep.subr.mxu0 0.0
  %492 = vmatpush2.msra.mxu0 %v381
  %493 = vmatprep.subr.mxu0 0.0
  %494 = vmatpush2.msra.mxu0 %v380
  %495 = vmatprep.subr.mxu0 0.0
  %496 = vmatpush2.msra.mxu0 %v379
  %497 = vmatprep.subr.mxu0 0.0
  %498 = vmatpush2.msra.mxu0 %v378
  %499 = vmatprep.subr.mxu0 0.0
  %500 = vmatpush2.msra.mxu0 %v377
  %501 = vmatprep.subr.mxu0 0.0
  %502 = vmatpush2.msra.mxu0 %v376
  %503 = vmatprep.subr.mxu0 0.0
  %504 = vmatpush2.msra.mxu0 %v375
  %505 = vmatprep.subr.mxu0 0.0
  %506 = vmatpush2.msra.mxu0 %v374
  %507 = vmatprep.subr.mxu0 0.0
  %508 = vmatpush2.msra.mxu0 %v373
  %509 = vmatprep.subr.mxu0 0.0
  %510 = vmatpush2.msra.mxu0 %v372
  %511 = vmatprep.subr.mxu0 0.0
  %512 = vmatpush2.msra.mxu0 %v371
  %513 = vmatprep.subr.mxu0 0.0
  %514 = vmatpush2.msra.mxu0 %v370
  %515 = vmatprep.subr.mxu0 0.0
  %516 = vmatpush2.msra.mxu0 %v369
  %517 = vmatprep.subr.mxu0 0.0
  %518 = vmatpush2.msra.mxu0 %v368
  %519 = vmatprep.subr.mxu0 0.0
  %520 = vmatpush2.msra.mxu0 %v367
  %521 = vmatprep.subr.mxu0 0.0
  %522 = vmatpush2.msra.mxu0 %v366
  %523 = vmatprep.mubr.f32.mxu0 %v317
  %524 = vmatmul.mubr.f32.gmra.mxu0 %v316
  %v525 = vpop.f32.mrf.mxu0
  %v526 = vadd.f32 %v456, %v525
  %v527 = vpop.f32.mrf.mxu0
  %528 = vdwg.mxu0
  %529 = vst [vmem:[%s5] sm:$0xff] %v526
  // Predicated region
  $region22: #{dqn_forward.7} parent=0 // pred_check
    _
  $region23: #{dqn_forward.7} parent=0 // pred_check_branch
    %531 = sbr.rel (0) target = $region25
  $region24: #{dqn_forward.7} parent=0 // pred_region
    _
  $region25: #{dqn_forward.7} parent=0 // pred_fallthru
    _
  // Predicated region
  $region26: #{dqn_forward.7} parent=0 // pred_check
    _
  $region27: #{dqn_forward.7} parent=0 // pred_check_branch
    %533 = sbr.rel (0) target = $region29
  $region28: #{dqn_forward.7} parent=0 // pred_region
    _
  $region29: #{dqn_forward.7} parent=0 // pred_fallthru
    _

</llo_original>
